<compile_context>
chip_gen: v5e
topology: v5e:2x2
jax: 0.10.0
libtpu: 0.0.40
codegen_flags: <defaults>
</compile_context>

<pallas_src>
import jax
import jax.numpy as jnp
from jax.experimental import pallas as pl
from jax.experimental.pallas import tpu as pltpu

D_IN = 784
D_HID = 512
D_IN_PAD = 896          # 7 * 128


def _round_up(n, m):
    return ((n + m - 1) // m) * m


def _swish_f32(h):
    # swish(h) = h * sigmoid(h) = h / (1 + exp(-h)); the divide goes to the
    # EUP via the approximate reciprocal (free slot next to the exp).
    return h * pl.reciprocal(1.0 + jnp.exp(-h), approx=True)


def _encoder_kernel(x_ref, w1_ref, b1_ref, w2_ref, b2_ref, w3_ref, b3_ref,
                    out_ref):
    x = x_ref[...]                                             # (bb, 896) f32

    # fc1 + swish (bf16 MXU operands, f32 accumulation / elementwise)
    h = jnp.dot(x.astype(jnp.bfloat16), w1_ref[...],
                preferred_element_type=jnp.float32) + b1_ref[...]
    h = _swish_f32(h)

    # fc2 + swish
    h = jnp.dot(h.astype(jnp.bfloat16), w2_ref[...],
                preferred_element_type=jnp.float32) + b2_ref[...]
    h = _swish_f32(h)

    # fused fc31 || fc32 (lane-dense, padded to ZP >= 128 columns)
    out = jnp.dot(h.astype(jnp.bfloat16), w3_ref[...],
                  preferred_element_type=jnp.float32) + b3_ref[...]
    out_ref[...] = out.astype(out_ref.dtype)


def variational_encoder(x, params, *, block_b=256):
    """x: (B, 784) float32.
    params: dict with w1 (784,512), w2 (512,512), w31/w32 (512,z), biases (1,out).
    Returns (mu, logvar), each (B, z_dim) in x.dtype."""
    B, d_in = x.shape
    assert d_in == D_IN
    z_dim = params["w31"].shape[1]

    # Output lane padding: mu||logvar packed into ZP >= 128 lanes.
    ZP = max(128, _round_up(2 * z_dim, 128))

    # Batch tile: multiple of 8 sublanes, capped by (padded) batch.
    block_b = _round_up(max(8, min(block_b, _round_up(B, 8))), 8)
    B_pad = _round_up(B, block_b)
    grid = (B_pad // block_b,)

    # --- Wrapper-side padding / packing / dtype casts (done once) ---
    x_p = jnp.zeros((B_pad, D_IN_PAD), x.dtype).at[:B, :D_IN].set(x)

    w1 = jnp.zeros((D_IN_PAD, D_HID), jnp.bfloat16)
    w1 = w1.at[:D_IN].set(params["w1"].astype(jnp.bfloat16))
    b1 = params["b1"].astype(jnp.float32)

    w2 = params["w2"].astype(jnp.bfloat16)
    b2 = params["b2"].astype(jnp.float32)

    w3 = jnp.zeros((D_HID, ZP), jnp.bfloat16)
    w3 = w3.at[:, :z_dim].set(params["w31"].astype(jnp.bfloat16))
    w3 = w3.at[:, z_dim:2 * z_dim].set(params["w32"].astype(jnp.bfloat16))
    b3 = jnp.zeros((1, ZP), jnp.float32)
    b3 = b3.at[:, :z_dim].set(params["b31"].astype(jnp.float32))
    b3 = b3.at[:, z_dim:2 * z_dim].set(params["b32"].astype(jnp.float32))

    full = lambda shape: pl.BlockSpec(shape, lambda i: (0, 0))

    out = pl.pallas_call(
        _encoder_kernel,
        out_shape=jax.ShapeDtypeStruct((B_pad, ZP), x.dtype),
        grid_spec=pltpu.PrefetchScalarGridSpec(
            num_scalar_prefetch=0,
            grid=grid,
            in_specs=[
                pl.BlockSpec((block_b, D_IN_PAD), lambda i: (i, 0)),  # x tile
                full((D_IN_PAD, D_HID)),                              # w1
                full((1, D_HID)),                                     # b1
                full((D_HID, D_HID)),                                 # w2
                full((1, D_HID)),                                     # b2
                full((D_HID, ZP)),                                    # w3 fused
                full((1, ZP)),                                        # b3 fused
            ],
            out_specs=pl.BlockSpec((block_b, ZP), lambda i: (i, 0)),
        ),
        compiler_params=pltpu.CompilerParams(
            dimension_semantics=("parallel",),
        ),
    )(x_p, w1, b1, w2, b2, w3, b3)

    mu = out[:B, :z_dim]
    logvar = out[:B, z_dim:2 * z_dim]
    return mu, logvar


def init_params(key, z_dim):
    """Deterministic init mimicking nn.Linear default (uniform +/- 1/sqrt(fan_in)).
    Weights are stored transposed: (in_features, out_features)."""
    def linear(key, fan_in, fan_out):
        kw, kb = jax.random.split(key)
        bound = 1.0 / jnp.sqrt(fan_in)
        w = jax.random.uniform(kw, (fan_in, fan_out), jnp.float32, -bound, bound)
        b = jax.random.uniform(kb, (1, fan_out), jnp.float32, -bound, bound)
        return w, b

    k1, k2, k3, k4 = jax.random.split(key, 4)
    w1, b1 = linear(k1, D_IN, D_HID)
    w2, b2 = linear(k2, D_HID, D_HID)
    w31, b31 = linear(k3, D_HID, z_dim)
    w32, b32 = linear(k4, D_HID, z_dim)
    return dict(w1=w1, b1=b1, w2=w2, b2=b2,
                w31=w31, b31=b31, w32=w32, b32=b32)


def _reference(x, p):
    def swish(v):
        return v * jax.nn.sigmoid(v)
    h = swish(x @ p["w1"] + p["b1"])
    h = swish(h @ p["w2"] + p["b2"])
    return h @ p["w31"] + p["b31"], h @ p["w32"] + p["b32"]


if __name__ == "__main__":
    key = jax.random.PRNGKey(0)
    kx, kp = jax.random.split(key)

    B, Z = 8, 32
    x = jax.random.normal(kx, (B, D_IN), dtype=jnp.float32)
    params = init_params(kp, Z)

    mu, logvar = variational_encoder(x, params)
    jax.block_until_ready((mu, logvar))

    mu_ref, lv_ref = _reference(x, params)
    # bf16 matmul operands (f32 accumulation) -> loosened tolerance vs f32 ref.
    assert mu.shape == (B, Z) and logvar.shape == (B, Z)
    assert jnp.allclose(mu, mu_ref, atol=3e-2, rtol=3e-2), \
        float(jnp.max(jnp.abs(mu - mu_ref)))
    assert jnp.allclose(logvar, lv_ref, atol=3e-2, rtol=3e-2), \
        float(jnp.max(jnp.abs(logvar - lv_ref)))

    print("KERNEL_OK")
</pallas_src>

<mosaic_0001>
module attributes {stable_mosaic.version = 11 : i64} {
  func.func @_encoder_kernel(%arg0: i32, %arg1: memref<8x896xf32, #tpu.memory_space<vmem>>, %arg2: memref<896x512xbf16, #tpu.memory_space<vmem>>, %arg3: memref<1x512xf32, #tpu.memory_space<vmem>>, %arg4: memref<512x512xbf16, #tpu.memory_space<vmem>>, %arg5: memref<1x512xf32, #tpu.memory_space<vmem>>, %arg6: memref<512x128xbf16, #tpu.memory_space<vmem>>, %arg7: memref<1x128xf32, #tpu.memory_space<vmem>>, %arg8: memref<8x128xf32, #tpu.memory_space<vmem>>) attributes {dimension_semantics = [#tpu.dimension_semantics<parallel>], iteration_bounds = array<i64: 1>, scalar_prefetch = 0 : i64, scratch_operands = 0 : i64, tpu.core_type = #tpu.core_type<tc>, window_params = [{transform_indices = @transform_0, window_bounds = array<i64: 8, 896>}, {pipeline_mode = #tpu.pipeline_mode<synchronous>, transform_indices = @transform_1, window_bounds = array<i64: 896, 512>}, {pipeline_mode = #tpu.pipeline_mode<synchronous>, transform_indices = @transform_2, window_bounds = array<i64: 1, 512>}, {pipeline_mode = #tpu.pipeline_mode<synchronous>, transform_indices = @transform_3, window_bounds = array<i64: 512, 512>}, {pipeline_mode = #tpu.pipeline_mode<synchronous>, transform_indices = @transform_4, window_bounds = array<i64: 1, 512>}, {pipeline_mode = #tpu.pipeline_mode<synchronous>, transform_indices = @transform_5, window_bounds = array<i64: 512, 128>}, {pipeline_mode = #tpu.pipeline_mode<synchronous>, transform_indices = @transform_6, window_bounds = array<i64: 1, 128>}, {transform_indices = @transform_7, window_bounds = array<i64: 8, 128>}]} {
    %c0 = arith.constant 0 : index
    %c0_0 = arith.constant 0 : index
    %0 = vector.load %arg1[%c0, %c0_0] : memref<8x896xf32, #tpu.memory_space<vmem>>, vector<8x896xf32>
    %1 = arith.truncf %0 : vector<8x896xf32> to vector<8x896xbf16>
    %c0_1 = arith.constant 0 : index
    %c0_2 = arith.constant 0 : index
    %2 = vector.load %arg2[%c0_1, %c0_2] : memref<896x512xbf16, #tpu.memory_space<vmem>>, vector<896x512xbf16>
    %cst = arith.constant dense<0.000000e+00> : vector<8x512xf32>
    %3 = tpu.matmul %1, %2, %cst {dimension_numbers = #tpu.dot_dimension_numbers<[1], [0], [0], [1], [0, 0, 1, 1], [], []>} : vector<8x896xbf16>, vector<896x512xbf16>, vector<8x512xf32> -> vector<8x512xf32>
    %c0_3 = arith.constant 0 : index
    %c0_4 = arith.constant 0 : index
    %4 = vector.load %arg3[%c0_3, %c0_4] : memref<1x512xf32, #tpu.memory_space<vmem>>, vector<1x512xf32>
    %5 = vector.broadcast %4 : vector<1x512xf32> to vector<8x512xf32>
    %6 = arith.addf %3, %5 : vector<8x512xf32>
    %cst_5 = arith.constant 0.000000e+00 : f32
    %7 = vector.broadcast %cst_5 : f32 to vector<8x512xf32>
    %8 = arith.subf %7, %6 : vector<8x512xf32>
    %9 = math.exp %8 : vector<8x512xf32>
    %cst_6 = arith.constant 1.000000e+00 : f32
    %10 = vector.broadcast %cst_6 : f32 to vector<8x512xf32>
    %11 = arith.addf %10, %9 : vector<8x512xf32>
    %12 = tpu.reciprocal %11 {approx = true} : vector<8x512xf32> -> vector<8x512xf32>
    %13 = arith.mulf %6, %12 : vector<8x512xf32>
    %14 = arith.truncf %13 : vector<8x512xf32> to vector<8x512xbf16>
    %c0_7 = arith.constant 0 : index
    %c0_8 = arith.constant 0 : index
    %15 = vector.load %arg4[%c0_7, %c0_8] : memref<512x512xbf16, #tpu.memory_space<vmem>>, vector<512x512xbf16>
    %cst_9 = arith.constant dense<0.000000e+00> : vector<8x512xf32>
    %16 = tpu.matmul %14, %15, %cst_9 {dimension_numbers = #tpu.dot_dimension_numbers<[1], [0], [0], [1], [0, 0, 1, 1], [], []>} : vector<8x512xbf16>, vector<512x512xbf16>, vector<8x512xf32> -> vector<8x512xf32>
    %c0_10 = arith.constant 0 : index
    %c0_11 = arith.constant 0 : index
    %17 = vector.load %arg5[%c0_10, %c0_11] : memref<1x512xf32, #tpu.memory_space<vmem>>, vector<1x512xf32>
    %18 = vector.broadcast %17 : vector<1x512xf32> to vector<8x512xf32>
    %19 = arith.addf %16, %18 : vector<8x512xf32>
    %cst_12 = arith.constant 0.000000e+00 : f32
    %20 = vector.broadcast %cst_12 : f32 to vector<8x512xf32>
    %21 = arith.subf %20, %19 : vector<8x512xf32>
    %22 = math.exp %21 : vector<8x512xf32>
    %cst_13 = arith.constant 1.000000e+00 : f32
    %23 = vector.broadcast %cst_13 : f32 to vector<8x512xf32>
    %24 = arith.addf %23, %22 : vector<8x512xf32>
    %25 = tpu.reciprocal %24 {approx = true} : vector<8x512xf32> -> vector<8x512xf32>
    %26 = arith.mulf %19, %25 : vector<8x512xf32>
    %27 = arith.truncf %26 : vector<8x512xf32> to vector<8x512xbf16>
    %c0_14 = arith.constant 0 : index
    %c0_15 = arith.constant 0 : index
    %28 = vector.load %arg6[%c0_14, %c0_15] : memref<512x128xbf16, #tpu.memory_space<vmem>>, vector<512x128xbf16>
    %cst_16 = arith.constant dense<0.000000e+00> : vector<8x128xf32>
    %29 = tpu.matmul %27, %28, %cst_16 {dimension_numbers = #tpu.dot_dimension_numbers<[1], [0], [0], [1], [0, 0, 1, 1], [], []>} : vector<8x512xbf16>, vector<512x128xbf16>, vector<8x128xf32> -> vector<8x128xf32>
    %c0_17 = arith.constant 0 : index
    %c0_18 = arith.constant 0 : index
    %30 = vector.load %arg7[%c0_17, %c0_18] : memref<1x128xf32, #tpu.memory_space<vmem>>, vector<1x128xf32>
    %31 = vector.broadcast %30 : vector<1x128xf32> to vector<8x128xf32>
    %32 = arith.addf %29, %31 : vector<8x128xf32>
    %c0_19 = arith.constant 0 : index
    %c0_20 = arith.constant 0 : index
    %33 = vector.load %arg8[%c0_19, %c0_20] : memref<8x128xf32, #tpu.memory_space<vmem>>, vector<8x128xf32>
    tpu.vector_store %arg8[%c0_19, %c0_20], %32 {strides = array<i32>} : memref<8x128xf32, #tpu.memory_space<vmem>>, vector<8x128xf32>,
    return
  }
  func.func @transform_0(%arg0: i32) -> (i32, i32) {
    %c0_i32 = arith.constant 0 : i32
    %c0_i32_0 = arith.constant 0 : i32
    return %arg0, %c0_i32 : i32, i32
  }
  func.func @transform_1(%arg0: i32) -> (i32, i32) {
    %c0_i32 = arith.constant 0 : i32
    %c0_i32_0 = arith.constant 0 : i32
    %c0_i32_1 = arith.constant 0 : i32
    return %c0_i32, %c0_i32_0 : i32, i32
  }
  func.func @transform_2(%arg0: i32) -> (i32, i32) {
    %c0_i32 = arith.constant 0 : i32
    %c0_i32_0 = arith.constant 0 : i32
    %c0_i32_1 = arith.constant 0 : i32
    return %c0_i32, %c0_i32_0 : i32, i32
  }
  func.func @transform_3(%arg0: i32) -> (i32, i32) {
    %c0_i32 = arith.constant 0 : i32
    %c0_i32_0 = arith.constant 0 : i32
    %c0_i32_1 = arith.constant 0 : i32
    return %c0_i32, %c0_i32_0 : i32, i32
  }
  func.func @transform_4(%arg0: i32) -> (i32, i32) {
    %c0_i32 = arith.constant 0 : i32
    %c0_i32_0 = arith.constant 0 : i32
    %c0_i32_1 = arith.constant 0 : i32
    return %c0_i32, %c0_i32_0 : i32, i32
  }
  func.func @transform_5(%arg0: i32) -> (i32, i32) {
    %c0_i32 = arith.constant 0 : i32
    %c0_i32_0 = arith.constant 0 : i32
    %c0_i32_1 = arith.constant 0 : i32
    return %c0_i32, %c0_i32_0 : i32, i32
  }
  func.func @transform_6(%arg0: i32) -> (i32, i32) {
    %c0_i32 = arith.constant 0 : i32
    %c0_i32_0 = arith.constant 0 : i32
    %c0_i32_1 = arith.constant 0 : i32
    return %c0_i32, %c0_i32_0 : i32, i32
  }
  func.func @transform_7(%arg0: i32) -> (i32, i32) {
    %c0_i32 = arith.constant 0 : i32
    %c0_i32_0 = arith.constant 0 : i32
    return %arg0, %c0_i32 : i32, i32
  }
}

</mosaic_0001>

<llo_original>
// kernel: tpu_custom_call.1
$region0: #{tpu_custom_call.1}
  #allocation0 [shape = 'u32[]', space=smem, size = 0x4, offset = 0x4, fixed_abs, tag = 'smem constant byte address 0x4 - core index']
  #allocation1 [shape = 'u32[72,128]{1,0:T(1,128)}', space=vmem, size = 0x9000, scoped, tag = 'internal scratch']
  %s0 = inlined_call_operand.hbm [shape: f32[8,896], index: 0, kind: input, shape index: {}]
  %s1 = inlined_call_operand.hbm [shape: bf16[896,512], index: 1, kind: input, shape index: {}]
  %s2 = inlined_call_operand.hbm [shape: f32[1,512], index: 2, kind: input, shape index: {}]
  %s3 = inlined_call_operand.hbm [shape: bf16[512,512], index: 3, kind: input, shape index: {}]
  %s4 = inlined_call_operand.hbm [shape: f32[1,512], index: 4, kind: input, shape index: {}]
  %s5 = inlined_call_operand.hbm [shape: bf16[512,128], index: 5, kind: input, shape index: {}]
  %s6 = inlined_call_operand.vmem [shape: f32[1,128], index: 6, kind: input, shape index: {}]
  %s7 = inlined_call_operand.hbm [shape: f32[8,128], index: 7, kind: output, shape index: {}]
  %s8 = sld [smem:[#allocation0]]
  $region62: #{tpu_custom_call.1} parent=0
    _
  %s10 = ssub.s32 1, %s8
  %s11 = scalar_select 0, %s10, %s8
  $region1: #{tpu_custom_call.1} parent=0
    #allocation2 [shape = 'u8[28672]{0}', space=vmem, size = 0x7000, scoped, tag = 'input window, operand 0, single buffered']
    #allocation3 [shape = 's32[1]{0}', space=sflag, size = 0x4, scoped, tag = 'scoped memory for tpu_custom_call.1']
    #allocation4 [shape = 's32[1]{0}', space=sflag, size = 0x4, scoped, tag = 'scoped memory for tpu_custom_call.1']
    #allocation5 [shape = 'u8[917504]{0}', space=vmem, size = 0xe0000, scoped, tag = 'input window, operand 1, single buffered']
    #allocation6 [shape = 's32[1]{0}', space=sflag, size = 0x4, scoped, tag = 'scoped memory for tpu_custom_call.1']
    #allocation7 [shape = 'u8[2048]{0}', space=vmem, size = 0x800, scoped, tag = 'input window, operand 2, single buffered']
    #allocation8 [shape = 'u8[524288]{0}', space=vmem, size = 0x80000, scoped, tag = 'input window, operand 3, single buffered']
    #allocation9 [shape = 's32[1]{0}', space=sflag, size = 0x4, scoped, tag = 'scoped memory for tpu_custom_call.1']
    #allocation10 [shape = 'u8[2048]{0}', space=vmem, size = 0x800, scoped, tag = 'input window, operand 4, single buffered']
    #allocation11 [shape = 'u8[131072]{0}', space=vmem, size = 0x20000, scoped, tag = 'input window, operand 5, single buffered']
    #allocation12 [shape = 's32[1]{0}', space=sflag, size = 0x4, scoped, tag = 'scoped memory for tpu_custom_call.1']
    #allocation13 [shape = 'u8[4096]{0}', space=vmem, size = 0x1000, scoped, tag = 'output window, operand 0, single buffered']
    %12 = vsyncpa [#allocation3], 0
    %13 = vsyncpa [#allocation6], 0
    %14 = vsyncpa [#allocation9], 0
    %15 = vsyncpa [#allocation12], 0
    %16 = vsyncpa [#allocation4], 0
    // Predicated region
    $region2: #{tpu_custom_call.1} parent=1 // pred_check
      _
    $region3: #{tpu_custom_call.1} parent=1 // pred_check_branch
      %18 = sbr.rel (0) target = $region5
    $region4: #{tpu_custom_call.1} parent=1 // pred_region
      %20 = vsyncadd [#allocation3], 0
      %s22 = sshll.u32 %s0, 4
      %s23 = int_to_ptr.hbm [resolvable:$true] %s22
      %s24 = sshll.u32 [#allocation2], 4
      %s25 = int_to_ptr.vmem [resolvable:$true] %s24
      %27 = dma.hbm_to_vmem [thread:$0]  %s23, 896, %s25, [#allocation3]
    $region5: #{tpu_custom_call.1} parent=1 // pred_fallthru
      _
    // Predicated region
    $region6: #{tpu_custom_call.1} parent=1 // pred_check
      _
    $region7: #{tpu_custom_call.1} parent=1 // pred_check_branch
      %29 = sbr.rel (0) target = $region9
    $region8: #{tpu_custom_call.1} parent=1 // pred_region
      %31 = vsyncadd [#allocation6], 0
      %s32 = sshll.u32 %s1, 4
      %s33 = int_to_ptr.hbm [resolvable:$true] %s32
      %s34 = sshll.u32 [#allocation5], 4
      %s35 = int_to_ptr.vmem [resolvable:$true] %s34
      %40 = dma.hbm_to_vmem [thread:$0]  %s33, 28672, %s35, [#allocation6], 256, 256, 16
    $region9: #{tpu_custom_call.1} parent=1 // pred_fallthru
      _
    // Predicated region
    $region10: #{tpu_custom_call.1} parent=1 // pred_check
      _
    $region11: #{tpu_custom_call.1} parent=1 // pred_check_branch
      %42 = sbr.rel (0) target = $region13
    $region12: #{tpu_custom_call.1} parent=1 // pred_region
      %44 = vsyncadd [#allocation6], 0
      %s46 = sshll.u32 %s2, 4
      %s47 = int_to_ptr.hbm [resolvable:$true] %s46
      %s48 = sshll.u32 [#allocation7], 4
      %s49 = int_to_ptr.vmem [resolvable:$true] %s48
      %51 = dma.hbm_to_vmem [thread:$0]  %s47, 64, %s49, [#allocation6]
    $region13: #{tpu_custom_call.1} parent=1 // pred_fallthru
      _
    // Predicated region
    $region14: #{tpu_custom_call.1} parent=1 // pred_check
      _
    $region15: #{tpu_custom_call.1} parent=1 // pred_check_branch
      %53 = sbr.rel (0) target = $region17
    $region16: #{tpu_custom_call.1} parent=1 // pred_region
      %55 = vsyncadd [#allocation9], 0
      %s56 = sshll.u32 %s3, 4
      %s57 = int_to_ptr.hbm [resolvable:$true] %s56
      %s58 = sshll.u32 [#allocation8], 4
      %s59 = int_to_ptr.vmem [resolvable:$true] %s58
      %64 = dma.hbm_to_vmem [thread:$0]  %s57, 16384, %s59, [#allocation9], 256, 256, 16
    $region17: #{tpu_custom_call.1} parent=1 // pred_fallthru
      _
    // Predicated region
    $region18: #{tpu_custom_call.1} parent=1 // pred_check
      _
    $region19: #{tpu_custom_call.1} parent=1 // pred_check_branch
      %66 = sbr.rel (0) target = $region21
    $region20: #{tpu_custom_call.1} parent=1 // pred_region
      %68 = vsyncadd [#allocation9], 0
      %s70 = sshll.u32 %s4, 4
      %s71 = int_to_ptr.hbm [resolvable:$true] %s70
      %s72 = sshll.u32 [#allocation10], 4
      %s73 = int_to_ptr.vmem [resolvable:$true] %s72
      %75 = dma.hbm_to_vmem [thread:$0]  %s71, 64, %s73, [#allocation9]
    $region21: #{tpu_custom_call.1} parent=1 // pred_fallthru
      _
    // Predicated region
    $region22: #{tpu_custom_call.1} parent=1 // pred_check
      _
    $region23: #{tpu_custom_call.1} parent=1 // pred_check_branch
      %77 = sbr.rel (0) target = $region25
    $region24: #{tpu_custom_call.1} parent=1 // pred_region
      %79 = vsyncadd [#allocation12], 0
      %s80 = sshll.u32 %s5, 4
      %s81 = int_to_ptr.hbm [resolvable:$true] %s80
      %s82 = sshll.u32 [#allocation11], 4
      %s83 = int_to_ptr.vmem [resolvable:$true] %s82
      %88 = dma.hbm_to_vmem [thread:$0]  %s81, 4096, %s83, [#allocation12], 64, 64, 4
    $region25: #{tpu_custom_call.1} parent=1 // pred_fallthru
      _
    // Predicated region
    $region26: #{tpu_custom_call.1} parent=1 // pred_check
      _
    $region27: #{tpu_custom_call.1} parent=1 // pred_check_branch
      %90 = sbr.rel (0) target = $region29
    $region28: #{tpu_custom_call.1} parent=1 // pred_region
      _
    $region29: #{tpu_custom_call.1} parent=1 // pred_fallthru
      _
    // Predicated region
    $region30: #{tpu_custom_call.1} parent=1 // pred_check
      _
    $region31: #{tpu_custom_call.1} parent=1 // pred_check_branch
      %92 = sbr.rel (0) target = $region33
    $region32: #{tpu_custom_call.1} parent=1 // pred_region
      %94 = dma.done [#allocation3], 896
    $region33: #{tpu_custom_call.1} parent=1 // pred_fallthru
      _
    // Predicated region
    $region34: #{tpu_custom_call.1} parent=1 // pred_check
      _
    $region35: #{tpu_custom_call.1} parent=1 // pred_check_branch
      %96 = sbr.rel (0) target = $region37
    $region36: #{tpu_custom_call.1} parent=1 // pred_region
      %98 = dma.done [#allocation6], 28672
    $region37: #{tpu_custom_call.1} parent=1 // pred_fallthru
      _
    // Predicated region
    $region38: #{tpu_custom_call.1} parent=1 // pred_check
      _
    $region39: #{tpu_custom_call.1} parent=1 // pred_check_branch
      %100 = sbr.rel (0) target = $region41
    $region40: #{tpu_custom_call.1} parent=1 // pred_region
      %102 = dma.done [#allocation6], 64
    $region41: #{tpu_custom_call.1} parent=1 // pred_fallthru
      _
    // Predicated region
    $region42: #{tpu_custom_call.1} parent=1 // pred_check
      _
    $region43: #{tpu_custom_call.1} parent=1 // pred_check_branch
      %104 = sbr.rel (0) target = $region45
    $region44: #{tpu_custom_call.1} parent=1 // pred_region
      %106 = dma.done [#allocation9], 16384
    $region45: #{tpu_custom_call.1} parent=1 // pred_fallthru
      _
    // Predicated region
    $region46: #{tpu_custom_call.1} parent=1 // pred_check
      _
    $region47: #{tpu_custom_call.1} parent=1 // pred_check_branch
      %108 = sbr.rel (0) target = $region49
    $region48: #{tpu_custom_call.1} parent=1 // pred_region
      %110 = dma.done [#allocation9], 64
    $region49: #{tpu_custom_call.1} parent=1 // pred_fallthru
      _
    // Predicated region
    $region50: #{tpu_custom_call.1} parent=1 // pred_check
      _
    $region51: #{tpu_custom_call.1} parent=1 // pred_check_branch
      %112 = sbr.rel (0) target = $region53
    $region52: #{tpu_custom_call.1} parent=1 // pred_region
      %114 = dma.done [#allocation12], 4096
    $region53: #{tpu_custom_call.1} parent=1 // pred_fallthru
      _
    %v115 = vld [vmem:[#allocation2] sm:$0xff]
    %v116 = vld [vmem:[#allocation2 + $0x8] sm:$0xff]
    %v117 = vld [vmem:[#allocation2 + $0x10] sm:$0xff]
    %v118 = vld [vmem:[#allocation2 + $0x18] sm:$0xff]
    %v119 = vld [vmem:[#allocation2 + $0x20] sm:$0xff]
    %v120 = vld [vmem:[#allocation2 + $0x28] sm:$0xff]
    %v121 = vld [vmem:[#allocation2 + $0x30] sm:$0xff]
    %v122 = vpack.c.bf16 %v115, %v115
    %v123 = vpack.c.bf16 %v116, %v116
    %v124 = vpack.c.bf16 %v117, %v117
    %v125 = vpack.c.bf16 %v118, %v118
    %v126 = vpack.c.bf16 %v119, %v119
    %v127 = vpack.c.bf16 %v120, %v120
    %v128 = vpack.c.bf16 %v121, %v121
    %v129 = vld [vmem:[#allocation5] sm:$0xff]
    %v130 = vld [vmem:[#allocation5 + $0x8] sm:$0xff]
    %v131 = vld [vmem:[#allocation5 + $0x10] sm:$0xff]
    %v132 = vld [vmem:[#allocation5 + $0x18] sm:$0xff]
    %v133 = vld [vmem:[#allocation5 + $0x20] sm:$0xff]
    %v134 = vld [vmem:[#allocation5 + $0x28] sm:$0xff]
    %v135 = vld [vmem:[#allocation5 + $0x30] sm:$0xff]
    %v136 = vld [vmem:[#allocation5 + $0x38] sm:$0xff]
    %v137 = vld [vmem:[#allocation5 + $0x40] sm:$0xff]
    %v138 = vld [vmem:[#allocation5 + $0x48] sm:$0xff]
    %v139 = vld [vmem:[#allocation5 + $0x50] sm:$0xff]
    %v140 = vld [vmem:[#allocation5 + $0x58] sm:$0xff]
    %v141 = vld [vmem:[#allocation5 + $0x60] sm:$0xff]
    %v142 = vld [vmem:[#allocation5 + $0x68] sm:$0xff]
    %v143 = vld [vmem:[#allocation5 + $0x70] sm:$0xff]
    %v144 = vld [vmem:[#allocation5 + $0x78] sm:$0xff]
    %v145 = vld [vmem:[#allocation5 + $0x80] sm:$0xff]
    %v146 = vld [vmem:[#allocation5 + $0x88] sm:$0xff]
    %v147 = vld [vmem:[#allocation5 + $0x90] sm:$0xff]
    %v148 = vld [vmem:[#allocation5 + $0x98] sm:$0xff]
    %v149 = vld [vmem:[#allocation5 + $0xa0] sm:$0xff]
    %v150 = vld [vmem:[#allocation5 + $0xa8] sm:$0xff]
    %v151 = vld [vmem:[#allocation5 + $0xb0] sm:$0xff]
    %v152 = vld [vmem:[#allocation5 + $0xb8] sm:$0xff]
    %v153 = vld [vmem:[#allocation5 + $0xc0] sm:$0xff]
    %v154 = vld [vmem:[#allocation5 + $0xc8] sm:$0xff]
    %v155 = vld [vmem:[#allocation5 + $0xd0] sm:$0xff]
    %v156 = vld [vmem:[#allocation5 + $0xd8] sm:$0xff]
    %v157 = vld [vmem:[#allocation5 + $0xe0] sm:$0xff]
    %v158 = vld [vmem:[#allocation5 + $0xe8] sm:$0xff]
    %v159 = vld [vmem:[#allocation5 + $0xf0] sm:$0xff]
    %v160 = vld [vmem:[#allocation5 + $0xf8] sm:$0xff]
    %v161 = vld [vmem:[#allocation5 + $0x100] sm:$0xff]
    %v162 = vld [vmem:[#allocation5 + $0x108] sm:$0xff]
    %v163 = vld [vmem:[#allocation5 + $0x110] sm:$0xff]
    %v164 = vld [vmem:[#allocation5 + $0x118] sm:$0xff]
    %v165 = vld [vmem:[#allocation5 + $0x120] sm:$0xff]
    %v166 = vld [vmem:[#allocation5 + $0x128] sm:$0xff]
    %v167 = vld [vmem:[#allocation5 + $0x130] sm:$0xff]
    %v168 = vld [vmem:[#allocation5 + $0x138] sm:$0xff]
    %v169 = vld [vmem:[#allocation5 + $0x140] sm:$0xff]
    %v170 = vld [vmem:[#allocation5 + $0x148] sm:$0xff]
    %v171 = vld [vmem:[#allocation5 + $0x150] sm:$0xff]
    %v172 = vld [vmem:[#allocation5 + $0x158] sm:$0xff]
    %v173 = vld [vmem:[#allocation5 + $0x160] sm:$0xff]
    %v174 = vld [vmem:[#allocation5 + $0x168] sm:$0xff]
    %v175 = vld [vmem:[#allocation5 + $0x170] sm:$0xff]
    %v176 = vld [vmem:[#allocation5 + $0x178] sm:$0xff]
    %v177 = vld [vmem:[#allocation5 + $0x180] sm:$0xff]
    %v178 = vld [vmem:[#allocation5 + $0x188] sm:$0xff]
    %v179 = vld [vmem:[#allocation5 + $0x190] sm:$0xff]
    %v180 = vld [vmem:[#allocation5 + $0x198] sm:$0xff]
    %v181 = vld [vmem:[#allocation5 + $0x1a0] sm:$0xff]
    %v182 = vld [vmem:[#allocation5 + $0x1a8] sm:$0xff]
    %v183 = vld [vmem:[#allocation5 + $0x1b0] sm:$0xff]
    %v184 = vld [vmem:[#allocation5 + $0x1b8] sm:$0xff]
    %v185 = vld [vmem:[#allocation5 + $0x1c0] sm:$0xff]
    %v186 = vld [vmem:[#allocation5 + $0x1c8] sm:$0xff]
    %v187 = vld [vmem:[#allocation5 + $0x1d0] sm:$0xff]
    %v188 = vld [vmem:[#allocation5 + $0x1d8] sm:$0xff]
    %v189 = vld [vmem:[#allocation5 + $0x1e0] sm:$0xff]
    %v190 = vld [vmem:[#allocation5 + $0x1e8] sm:$0xff]
    %v191 = vld [vmem:[#allocation5 + $0x1f0] sm:$0xff]
    %v192 = vld [vmem:[#allocation5 + $0x1f8] sm:$0xff]
    %v193 = vld [vmem:[#allocation5 + $0x200] sm:$0xff]
    %v194 = vld [vmem:[#allocation5 + $0x208] sm:$0xff]
    %v195 = vld [vmem:[#allocation5 + $0x210] sm:$0xff]
    %v196 = vld [vmem:[#allocation5 + $0x218] sm:$0xff]
    %v197 = vld [vmem:[#allocation5 + $0x220] sm:$0xff]
    %v198 = vld [vmem:[#allocation5 + $0x228] sm:$0xff]
    %v199 = vld [vmem:[#allocation5 + $0x230] sm:$0xff]
    %v200 = vld [vmem:[#allocation5 + $0x238] sm:$0xff]
    %v201 = vld [vmem:[#allocation5 + $0x240] sm:$0xff]
    %v202 = vld [vmem:[#allocation5 + $0x248] sm:$0xff]
    %v203 = vld [vmem:[#allocation5 + $0x250] sm:$0xff]
    %v204 = vld [vmem:[#allocation5 + $0x258] sm:$0xff]
    %v205 = vld [vmem:[#allocation5 + $0x260] sm:$0xff]
    %v206 = vld [vmem:[#allocation5 + $0x268] sm:$0xff]
    %v207 = vld [vmem:[#allocation5 + $0x270] sm:$0xff]
    %v208 = vld [vmem:[#allocation5 + $0x278] sm:$0xff]
    %v209 = vld [vmem:[#allocation5 + $0x280] sm:$0xff]
    %v210 = vld [vmem:[#allocation5 + $0x288] sm:$0xff]
    %v211 = vld [vmem:[#allocation5 + $0x290] sm:$0xff]
    %v212 = vld [vmem:[#allocation5 + $0x298] sm:$0xff]
    %v213 = vld [vmem:[#allocation5 + $0x2a0] sm:$0xff]
    %v214 = vld [vmem:[#allocation5 + $0x2a8] sm:$0xff]
    %v215 = vld [vmem:[#allocation5 + $0x2b0] sm:$0xff]
    %v216 = vld [vmem:[#allocation5 + $0x2b8] sm:$0xff]
    %v217 = vld [vmem:[#allocation5 + $0x2c0] sm:$0xff]
    %v218 = vld [vmem:[#allocation5 + $0x2c8] sm:$0xff]
    %v219 = vld [vmem:[#allocation5 + $0x2d0] sm:$0xff]
    %v220 = vld [vmem:[#allocation5 + $0x2d8] sm:$0xff]
    %v221 = vld [vmem:[#allocation5 + $0x2e0] sm:$0xff]
    %v222 = vld [vmem:[#allocation5 + $0x2e8] sm:$0xff]
    %v223 = vld [vmem:[#allocation5 + $0x2f0] sm:$0xff]
    %v224 = vld [vmem:[#allocation5 + $0x2f8] sm:$0xff]
    %v225 = vld [vmem:[#allocation5 + $0x300] sm:$0xff]
    %v226 = vld [vmem:[#allocation5 + $0x308] sm:$0xff]
    %v227 = vld [vmem:[#allocation5 + $0x310] sm:$0xff]
    %v228 = vld [vmem:[#allocation5 + $0x318] sm:$0xff]
    %v229 = vld [vmem:[#allocation5 + $0x320] sm:$0xff]
    %v230 = vld [vmem:[#allocation5 + $0x328] sm:$0xff]
    %v231 = vld [vmem:[#allocation5 + $0x330] sm:$0xff]
    %v232 = vld [vmem:[#allocation5 + $0x338] sm:$0xff]
    %v233 = vld [vmem:[#allocation5 + $0x340] sm:$0xff]
    %v234 = vld [vmem:[#allocation5 + $0x348] sm:$0xff]
    %v235 = vld [vmem:[#allocation5 + $0x350] sm:$0xff]
    %v236 = vld [vmem:[#allocation5 + $0x358] sm:$0xff]
    %v237 = vld [vmem:[#allocation5 + $0x360] sm:$0xff]
    %v238 = vld [vmem:[#allocation5 + $0x368] sm:$0xff]
    %v239 = vld [vmem:[#allocation5 + $0x370] sm:$0xff]
    %v240 = vld [vmem:[#allocation5 + $0x378] sm:$0xff]
    %v241 = vld [vmem:[#allocation5 + $0x380] sm:$0xff]
    %v242 = vld [vmem:[#allocation5 + $0x388] sm:$0xff]
    %v243 = vld [vmem:[#allocation5 + $0x390] sm:$0xff]
    %v244 = vld [vmem:[#allocation5 + $0x398] sm:$0xff]
    %v245 = vld [vmem:[#allocation5 + $0x3a0] sm:$0xff]
    %v246 = vld [vmem:[#allocation5 + $0x3a8] sm:$0xff]
    %v247 = vld [vmem:[#allocation5 + $0x3b0] sm:$0xff]
    %v248 = vld [vmem:[#allocation5 + $0x3b8] sm:$0xff]
    %v249 = vld [vmem:[#allocation5 + $0x3c0] sm:$0xff]
    %v250 = vld [vmem:[#allocation5 + $0x3c8] sm:$0xff]
    %v251 = vld [vmem:[#allocation5 + $0x3d0] sm:$0xff]
    %v252 = vld [vmem:[#allocation5 + $0x3d8] sm:$0xff]
    %v253 = vld [vmem:[#allocation5 + $0x3e0] sm:$0xff]
    %v254 = vld [vmem:[#allocation5 + $0x3e8] sm:$0xff]
    %v255 = vld [vmem:[#allocation5 + $0x3f0] sm:$0xff]
    %v256 = vld [vmem:[#allocation5 + $0x3f8] sm:$0xff]
    %v257 = vld [vmem:[#allocation5 + $0x400] sm:$0xff]
    %v258 = vld [vmem:[#allocation5 + $0x408] sm:$0xff]
    %v259 = vld [vmem:[#allocation5 + $0x410] sm:$0xff]
    %v260 = vld [vmem:[#allocation5 + $0x418] sm:$0xff]
    %v261 = vld [vmem:[#allocation5 + $0x420] sm:$0xff]
    %v262 = vld [vmem:[#allocation5 + $0x428] sm:$0xff]
    %v263 = vld [vmem:[#allocation5 + $0x430] sm:$0xff]
    %v264 = vld [vmem:[#allocation5 + $0x438] sm:$0xff]
    %v265 = vld [vmem:[#allocation5 + $0x440] sm:$0xff]
    %v266 = vld [vmem:[#allocation5 + $0x448] sm:$0xff]
    %v267 = vld [vmem:[#allocation5 + $0x450] sm:$0xff]
    %v268 = vld [vmem:[#allocation5 + $0x458] sm:$0xff]
    %v269 = vld [vmem:[#allocation5 + $0x460] sm:$0xff]
    %v270 = vld [vmem:[#allocation5 + $0x468] sm:$0xff]
    %v271 = vld [vmem:[#allocation5 + $0x470] sm:$0xff]
    %v272 = vld [vmem:[#allocation5 + $0x478] sm:$0xff]
    %v273 = vld [vmem:[#allocation5 + $0x480] sm:$0xff]
    %v274 = vld [vmem:[#allocation5 + $0x488] sm:$0xff]
    %v275 = vld [vmem:[#allocation5 + $0x490] sm:$0xff]
    %v276 = vld [vmem:[#allocation5 + $0x498] sm:$0xff]
    %v277 = vld [vmem:[#allocation5 + $0x4a0] sm:$0xff]
    %v278 = vld [vmem:[#allocation5 + $0x4a8] sm:$0xff]
    %v279 = vld [vmem:[#allocation5 + $0x4b0] sm:$0xff]
    %v280 = vld [vmem:[#allocation5 + $0x4b8] sm:$0xff]
    %v281 = vld [vmem:[#allocation5 + $0x4c0] sm:$0xff]
    %v282 = vld [vmem:[#allocation5 + $0x4c8] sm:$0xff]
    %v283 = vld [vmem:[#allocation5 + $0x4d0] sm:$0xff]
    %v284 = vld [vmem:[#allocation5 + $0x4d8] sm:$0xff]
    %v285 = vld [vmem:[#allocation5 + $0x4e0] sm:$0xff]
    %v286 = vld [vmem:[#allocation5 + $0x4e8] sm:$0xff]
    %v287 = vld [vmem:[#allocation5 + $0x4f0] sm:$0xff]
    %v288 = vld [vmem:[#allocation5 + $0x4f8] sm:$0xff]
    %v289 = vld [vmem:[#allocation5 + $0x500] sm:$0xff]
    %v290 = vld [vmem:[#allocation5 + $0x508] sm:$0xff]
    %v291 = vld [vmem:[#allocation5 + $0x510] sm:$0xff]
    %v292 = vld [vmem:[#allocation5 + $0x518] sm:$0xff]
    %v293 = vld [vmem:[#allocation5 + $0x520] sm:$0xff]
    %v294 = vld [vmem:[#allocation5 + $0x528] sm:$0xff]
    %v295 = vld [vmem:[#allocation5 + $0x530] sm:$0xff]
    %v296 = vld [vmem:[#allocation5 + $0x538] sm:$0xff]
    %v297 = vld [vmem:[#allocation5 + $0x540] sm:$0xff]
    %v298 = vld [vmem:[#allocation5 + $0x548] sm:$0xff]
    %v299 = vld [vmem:[#allocation5 + $0x550] sm:$0xff]
    %v300 = vld [vmem:[#allocation5 + $0x558] sm:$0xff]
    %v301 = vld [vmem:[#allocation5 + $0x560] sm:$0xff]
    %v302 = vld [vmem:[#allocation5 + $0x568] sm:$0xff]
    %v303 = vld [vmem:[#allocation5 + $0x570] sm:$0xff]
    %v304 = vld [vmem:[#allocation5 + $0x578] sm:$0xff]
    %v305 = vld [vmem:[#allocation5 + $0x580] sm:$0xff]
    %v306 = vld [vmem:[#allocation5 + $0x588] sm:$0xff]
    %v307 = vld [vmem:[#allocation5 + $0x590] sm:$0xff]
    %v308 = vld [vmem:[#allocation5 + $0x598] sm:$0xff]
    %v309 = vld [vmem:[#allocation5 + $0x5a0] sm:$0xff]
    %v310 = vld [vmem:[#allocation5 + $0x5a8] sm:$0xff]
    %v311 = vld [vmem:[#allocation5 + $0x5b0] sm:$0xff]
    %v312 = vld [vmem:[#allocation5 + $0x5b8] sm:$0xff]
    %v313 = vld [vmem:[#allocation5 + $0x5c0] sm:$0xff]
    %v314 = vld [vmem:[#allocation5 + $0x5c8] sm:$0xff]
    %v315 = vld [vmem:[#allocation5 + $0x5d0] sm:$0xff]
    %v316 = vld [vmem:[#allocation5 + $0x5d8] sm:$0xff]
    %v317 = vld [vmem:[#allocation5 + $0x5e0] sm:$0xff]
    %v318 = vld [vmem:[#allocation5 + $0x5e8] sm:$0xff]
    %v319 = vld [vmem:[#allocation5 + $0x5f0] sm:$0xff]
    %v320 = vld [vmem:[#allocation5 + $0x5f8] sm:$0xff]
    %v321 = vld [vmem:[#allocation5 + $0x600] sm:$0xff]
    %v322 = vld [vmem:[#allocation5 + $0x608] sm:$0xff]
    %v323 = vld [vmem:[#allocation5 + $0x610] sm:$0xff]
    %v324 = vld [vmem:[#allocation5 + $0x618] sm:$0xff]
    %v325 = vld [vmem:[#allocation5 + $0x620] sm:$0xff]
    %v326 = vld [vmem:[#allocation5 + $0x628] sm:$0xff]
    %v327 = vld [vmem:[#allocation5 + $0x630] sm:$0xff]
    %v328 = vld [vmem:[#allocation5 + $0x638] sm:$0xff]
    %v329 = vld [vmem:[#allocation5 + $0x640] sm:$0xff]
    %v330 = vld [vmem:[#allocation5 + $0x648] sm:$0xff]
    %v331 = vld [vmem:[#allocation5 + $0x650] sm:$0xff]
    %v332 = vld [vmem:[#allocation5 + $0x658] sm:$0xff]
    %v333 = vld [vmem:[#allocation5 + $0x660] sm:$0xff]
    %v334 = vld [vmem:[#allocation5 + $0x668] sm:$0xff]
    %v335 = vld [vmem:[#allocation5 + $0x670] sm:$0xff]
    %v336 = vld [vmem:[#allocation5 + $0x678] sm:$0xff]
    %v337 = vld [vmem:[#allocation5 + $0x680] sm:$0xff]
    %v338 = vld [vmem:[#allocation5 + $0x688] sm:$0xff]
    %v339 = vld [vmem:[#allocation5 + $0x690] sm:$0xff]
    %v340 = vld [vmem:[#allocation5 + $0x698] sm:$0xff]
    %v341 = vld [vmem:[#allocation5 + $0x6a0] sm:$0xff]
    %v342 = vld [vmem:[#allocation5 + $0x6a8] sm:$0xff]
    %v343 = vld [vmem:[#allocation5 + $0x6b0] sm:$0xff]
    %v344 = vld [vmem:[#allocation5 + $0x6b8] sm:$0xff]
    %v345 = vld [vmem:[#allocation5 + $0x6c0] sm:$0xff]
    %v346 = vld [vmem:[#allocation5 + $0x6c8] sm:$0xff]
    %v347 = vld [vmem:[#allocation5 + $0x6d0] sm:$0xff]
    %v348 = vld [vmem:[#allocation5 + $0x6d8] sm:$0xff]
    %v349 = vld [vmem:[#allocation5 + $0x6e0] sm:$0xff]
    %v350 = vld [vmem:[#allocation5 + $0x6e8] sm:$0xff]
    %v351 = vld [vmem:[#allocation5 + $0x6f0] sm:$0xff]
    %v352 = vld [vmem:[#allocation5 + $0x6f8] sm:$0xff]
    %v353 = vld [vmem:[#allocation7] sm:$0xf]
    %v355 = vperm.slane %v353, 0
    %v356 = vperm.slane %v353, 1
    %v357 = vperm.slane %v353, 2
    %v358 = vperm.slane %v353, 3
    %v587 = vunpack.c.l.b16 %v129
    %v588 = vunpack.c.h.b16 %v129
    %v589 = vunpack.c.l.b16 %v130
    %v590 = vunpack.c.h.b16 %v130
    %v591 = vunpack.c.l.b16 %v131
    %v592 = vunpack.c.h.b16 %v131
    %v593 = vunpack.c.l.b16 %v132
    %v594 = vunpack.c.h.b16 %v132
    %v595 = vunpack.c.l.b16 %v133
    %v596 = vunpack.c.h.b16 %v133
    %v597 = vunpack.c.l.b16 %v134
    %v598 = vunpack.c.h.b16 %v134
    %v599 = vunpack.c.l.b16 %v135
    %v600 = vunpack.c.h.b16 %v135
    %v601 = vunpack.c.l.b16 %v136
    %v602 = vunpack.c.h.b16 %v136
    %v603 = vunpack.c.l.b16 %v137
    %v604 = vunpack.c.h.b16 %v137
    %v605 = vunpack.c.l.b16 %v138
    %v606 = vunpack.c.h.b16 %v138
    %v607 = vunpack.c.l.b16 %v139
    %v608 = vunpack.c.h.b16 %v139
    %v609 = vunpack.c.l.b16 %v140
    %v610 = vunpack.c.h.b16 %v140
    %v611 = vunpack.c.l.b16 %v141
    %v612 = vunpack.c.h.b16 %v141
    %v613 = vunpack.c.l.b16 %v142
    %v614 = vunpack.c.h.b16 %v142
    %v615 = vunpack.c.l.b16 %v143
    %v616 = vunpack.c.h.b16 %v143
    %v617 = vunpack.c.l.b16 %v144
    %v618 = vunpack.c.h.b16 %v144
    %v619 = vunpack.c.l.b16 %v145
    %v620 = vunpack.c.h.b16 %v145
    %v621 = vunpack.c.l.b16 %v146
    %v622 = vunpack.c.h.b16 %v146
    %v623 = vunpack.c.l.b16 %v147
    %v624 = vunpack.c.h.b16 %v147
    %v625 = vunpack.c.l.b16 %v148
    %v626 = vunpack.c.h.b16 %v148
    %v627 = vunpack.c.l.b16 %v149
    %v628 = vunpack.c.h.b16 %v149
    %v629 = vunpack.c.l.b16 %v150
    %v630 = vunpack.c.h.b16 %v150
    %v631 = vunpack.c.l.b16 %v151
    %v632 = vunpack.c.h.b16 %v151
    %v633 = vunpack.c.l.b16 %v152
    %v634 = vunpack.c.h.b16 %v152
    %v635 = vunpack.c.l.b16 %v153
    %v636 = vunpack.c.h.b16 %v153
    %v637 = vunpack.c.l.b16 %v154
    %v638 = vunpack.c.h.b16 %v154
    %v639 = vunpack.c.l.b16 %v155
    %v640 = vunpack.c.h.b16 %v155
    %v641 = vunpack.c.l.b16 %v156
    %v642 = vunpack.c.h.b16 %v156
    %v643 = vunpack.c.l.b16 %v157
    %v644 = vunpack.c.h.b16 %v157
    %v645 = vunpack.c.l.b16 %v158
    %v646 = vunpack.c.h.b16 %v158
    %v647 = vunpack.c.l.b16 %v159
    %v648 = vunpack.c.h.b16 %v159
    %v649 = vunpack.c.l.b16 %v160
    %v650 = vunpack.c.h.b16 %v160
    %v651 = vunpack.c.l.b16 %v161
    %v652 = vunpack.c.h.b16 %v161
    %v653 = vunpack.c.l.b16 %v162
    %v654 = vunpack.c.h.b16 %v162
    %v655 = vunpack.c.l.b16 %v163
    %v656 = vunpack.c.h.b16 %v163
    %v657 = vunpack.c.l.b16 %v164
    %v658 = vunpack.c.h.b16 %v164
    %v659 = vunpack.c.l.b16 %v165
    %v660 = vunpack.c.h.b16 %v165
    %v661 = vunpack.c.l.b16 %v166
    %v662 = vunpack.c.h.b16 %v166
    %v663 = vunpack.c.l.b16 %v167
    %v664 = vunpack.c.h.b16 %v167
    %v665 = vunpack.c.l.b16 %v168
    %v666 = vunpack.c.h.b16 %v168
    %v667 = vunpack.c.l.b16 %v169
    %v668 = vunpack.c.h.b16 %v169
    %v669 = vunpack.c.l.b16 %v170
    %v670 = vunpack.c.h.b16 %v170
    %v671 = vunpack.c.l.b16 %v171
    %v672 = vunpack.c.h.b16 %v171
    %v673 = vunpack.c.l.b16 %v172
    %v674 = vunpack.c.h.b16 %v172
    %v675 = vunpack.c.l.b16 %v173
    %v676 = vunpack.c.h.b16 %v173
    %v677 = vunpack.c.l.b16 %v174
    %v678 = vunpack.c.h.b16 %v174
    %v679 = vunpack.c.l.b16 %v175
    %v680 = vunpack.c.h.b16 %v175
    %v681 = vunpack.c.l.b16 %v176
    %v682 = vunpack.c.h.b16 %v176
    %v683 = vunpack.c.l.b16 %v177
    %v684 = vunpack.c.h.b16 %v177
    %v685 = vunpack.c.l.b16 %v178
    %v686 = vunpack.c.h.b16 %v178
    %v687 = vunpack.c.l.b16 %v179
    %v688 = vunpack.c.h.b16 %v179
    %v689 = vunpack.c.l.b16 %v180
    %v690 = vunpack.c.h.b16 %v180
    %v691 = vunpack.c.l.b16 %v181
    %v692 = vunpack.c.h.b16 %v181
    %v693 = vunpack.c.l.b16 %v182
    %v694 = vunpack.c.h.b16 %v182
    %v695 = vunpack.c.l.b16 %v183
    %v696 = vunpack.c.h.b16 %v183
    %v697 = vunpack.c.l.b16 %v184
    %v698 = vunpack.c.h.b16 %v184
    %v699 = vunpack.c.l.b16 %v185
    %v700 = vunpack.c.h.b16 %v185
    %v701 = vunpack.c.l.b16 %v186
    %v702 = vunpack.c.h.b16 %v186
    %v703 = vunpack.c.l.b16 %v187
    %v704 = vunpack.c.h.b16 %v187
    %v705 = vunpack.c.l.b16 %v188
    %v706 = vunpack.c.h.b16 %v188
    %v707 = vunpack.c.l.b16 %v189
    %v708 = vunpack.c.h.b16 %v189
    %v709 = vunpack.c.l.b16 %v190
    %v710 = vunpack.c.h.b16 %v190
    %v711 = vunpack.c.l.b16 %v191
    %v712 = vunpack.c.h.b16 %v191
    %v713 = vunpack.c.l.b16 %v192
    %v714 = vunpack.c.h.b16 %v192
    %v715 = vunpack.c.l.b16 %v193
    %v716 = vunpack.c.h.b16 %v193
    %v717 = vunpack.c.l.b16 %v194
    %v718 = vunpack.c.h.b16 %v194
    %v719 = vunpack.c.l.b16 %v195
    %v720 = vunpack.c.h.b16 %v195
    %v721 = vunpack.c.l.b16 %v196
    %v722 = vunpack.c.h.b16 %v196
    %v723 = vunpack.c.l.b16 %v197
    %v724 = vunpack.c.h.b16 %v197
    %v725 = vunpack.c.l.b16 %v198
    %v726 = vunpack.c.h.b16 %v198
    %v727 = vunpack.c.l.b16 %v199
    %v728 = vunpack.c.h.b16 %v199
    %v729 = vunpack.c.l.b16 %v200
    %v730 = vunpack.c.h.b16 %v200
    %v731 = vunpack.c.l.b16 %v201
    %v732 = vunpack.c.h.b16 %v201
    %v733 = vunpack.c.l.b16 %v202
    %v734 = vunpack.c.h.b16 %v202
    %v735 = vunpack.c.l.b16 %v203
    %v736 = vunpack.c.h.b16 %v203
    %v737 = vunpack.c.l.b16 %v204
    %v738 = vunpack.c.h.b16 %v204
    %v739 = vunpack.c.l.b16 %v205
    %v740 = vunpack.c.h.b16 %v205
    %v741 = vunpack.c.l.b16 %v206
    %v742 = vunpack.c.h.b16 %v206
    %v743 = vunpack.c.l.b16 %v207
    %v744 = vunpack.c.h.b16 %v207
    %v745 = vunpack.c.l.b16 %v208
    %v746 = vunpack.c.h.b16 %v208
    %v747 = vunpack.c.l.b16 %v209
    %v748 = vunpack.c.h.b16 %v209
    %v749 = vunpack.c.l.b16 %v210
    %v750 = vunpack.c.h.b16 %v210
    %v751 = vunpack.c.l.b16 %v211
    %v752 = vunpack.c.h.b16 %v211
    %v753 = vunpack.c.l.b16 %v212
    %v754 = vunpack.c.h.b16 %v212
    %v755 = vunpack.c.l.b16 %v213
    %v756 = vunpack.c.h.b16 %v213
    %v757 = vunpack.c.l.b16 %v214
    %v758 = vunpack.c.h.b16 %v214
    %v759 = vunpack.c.l.b16 %v215
    %v760 = vunpack.c.h.b16 %v215
    %v761 = vunpack.c.l.b16 %v216
    %v762 = vunpack.c.h.b16 %v216
    %v763 = vunpack.c.l.b16 %v217
    %v764 = vunpack.c.h.b16 %v217
    %v765 = vunpack.c.l.b16 %v218
    %v766 = vunpack.c.h.b16 %v218
    %v767 = vunpack.c.l.b16 %v219
    %v768 = vunpack.c.h.b16 %v219
    %v769 = vunpack.c.l.b16 %v220
    %v770 = vunpack.c.h.b16 %v220
    %v771 = vunpack.c.l.b16 %v221
    %v772 = vunpack.c.h.b16 %v221
    %v773 = vunpack.c.l.b16 %v222
    %v774 = vunpack.c.h.b16 %v222
    %v775 = vunpack.c.l.b16 %v223
    %v776 = vunpack.c.h.b16 %v223
    %v777 = vunpack.c.l.b16 %v224
    %v778 = vunpack.c.h.b16 %v224
    %v779 = vunpack.c.l.b16 %v225
    %v780 = vunpack.c.h.b16 %v225
    %v781 = vunpack.c.l.b16 %v226
    %v782 = vunpack.c.h.b16 %v226
    %v783 = vunpack.c.l.b16 %v227
    %v784 = vunpack.c.h.b16 %v227
    %v785 = vunpack.c.l.b16 %v228
    %v786 = vunpack.c.h.b16 %v228
    %v787 = vunpack.c.l.b16 %v229
    %v788 = vunpack.c.h.b16 %v229
    %v789 = vunpack.c.l.b16 %v230
    %v790 = vunpack.c.h.b16 %v230
    %v791 = vunpack.c.l.b16 %v231
    %v792 = vunpack.c.h.b16 %v231
    %v793 = vunpack.c.l.b16 %v232
    %v794 = vunpack.c.h.b16 %v232
    %v795 = vunpack.c.l.b16 %v233
    %v796 = vunpack.c.h.b16 %v233
    %v797 = vunpack.c.l.b16 %v234
    %v798 = vunpack.c.h.b16 %v234
    %v799 = vunpack.c.l.b16 %v235
    %v800 = vunpack.c.h.b16 %v235
    %v801 = vunpack.c.l.b16 %v236
    %v802 = vunpack.c.h.b16 %v236
    %v803 = vunpack.c.l.b16 %v237
    %v804 = vunpack.c.h.b16 %v237
    %v805 = vunpack.c.l.b16 %v238
    %v806 = vunpack.c.h.b16 %v238
    %v807 = vunpack.c.l.b16 %v239
    %v808 = vunpack.c.h.b16 %v239
    %v809 = vunpack.c.l.b16 %v240
    %v810 = vunpack.c.h.b16 %v240
    %v811 = vunpack.c.l.b16 %v241
    %v812 = vunpack.c.h.b16 %v241
    %v813 = vunpack.c.l.b16 %v242
    %v814 = vunpack.c.h.b16 %v242
    %v815 = vunpack.c.l.b16 %v243
    %v816 = vunpack.c.h.b16 %v243
    %v817 = vunpack.c.l.b16 %v244
    %v818 = vunpack.c.h.b16 %v244
    %v819 = vunpack.c.l.b16 %v245
    %v820 = vunpack.c.h.b16 %v245
    %v821 = vunpack.c.l.b16 %v246
    %v822 = vunpack.c.h.b16 %v246
    %v823 = vunpack.c.l.b16 %v247
    %v824 = vunpack.c.h.b16 %v247
    %v825 = vunpack.c.l.b16 %v248
    %v826 = vunpack.c.h.b16 %v248
    %v827 = vunpack.c.l.b16 %v249
    %v828 = vunpack.c.h.b16 %v249
    %v829 = vunpack.c.l.b16 %v250
    %v830 = vunpack.c.h.b16 %v250
    %v831 = vunpack.c.l.b16 %v251
    %v832 = vunpack.c.h.b16 %v251
    %v833 = vunpack.c.l.b16 %v252
    %v834 = vunpack.c.h.b16 %v252
    %v835 = vunpack.c.l.b16 %v253
    %v836 = vunpack.c.h.b16 %v253
    %v837 = vunpack.c.l.b16 %v254
    %v838 = vunpack.c.h.b16 %v254
    %v839 = vunpack.c.l.b16 %v255
    %v840 = vunpack.c.h.b16 %v255
    %v841 = vunpack.c.l.b16 %v256
    %v842 = vunpack.c.h.b16 %v256
    %v843 = vunpack.c.l.b16 %v257
    %v844 = vunpack.c.h.b16 %v257
    %v845 = vunpack.c.l.b16 %v258
    %v846 = vunpack.c.h.b16 %v258
    %v847 = vunpack.c.l.b16 %v259
    %v848 = vunpack.c.h.b16 %v259
    %v849 = vunpack.c.l.b16 %v260
    %v850 = vunpack.c.h.b16 %v260
    %v851 = vunpack.c.l.b16 %v261
    %v852 = vunpack.c.h.b16 %v261
    %v853 = vunpack.c.l.b16 %v262
    %v854 = vunpack.c.h.b16 %v262
    %v855 = vunpack.c.l.b16 %v263
    %v856 = vunpack.c.h.b16 %v263
    %v857 = vunpack.c.l.b16 %v264
    %v858 = vunpack.c.h.b16 %v264
    %v859 = vunpack.c.l.b16 %v265
    %v860 = vunpack.c.h.b16 %v265
    %v861 = vunpack.c.l.b16 %v266
    %v862 = vunpack.c.h.b16 %v266
    %v863 = vunpack.c.l.b16 %v267
    %v864 = vunpack.c.h.b16 %v267
    %v865 = vunpack.c.l.b16 %v268
    %v866 = vunpack.c.h.b16 %v268
    %v867 = vunpack.c.l.b16 %v269
    %v868 = vunpack.c.h.b16 %v269
    %v869 = vunpack.c.l.b16 %v270
    %v870 = vunpack.c.h.b16 %v270
    %v871 = vunpack.c.l.b16 %v271
    %v872 = vunpack.c.h.b16 %v271
    %v873 = vunpack.c.l.b16 %v272
    %v874 = vunpack.c.h.b16 %v272
    %v875 = vunpack.c.l.b16 %v273
    %v876 = vunpack.c.h.b16 %v273
    %v877 = vunpack.c.l.b16 %v274
    %v878 = vunpack.c.h.b16 %v274
    %v879 = vunpack.c.l.b16 %v275
    %v880 = vunpack.c.h.b16 %v275
    %v881 = vunpack.c.l.b16 %v276
    %v882 = vunpack.c.h.b16 %v276
    %v883 = vunpack.c.l.b16 %v277
    %v884 = vunpack.c.h.b16 %v277
    %v885 = vunpack.c.l.b16 %v278
    %v886 = vunpack.c.h.b16 %v278
    %v887 = vunpack.c.l.b16 %v279
    %v888 = vunpack.c.h.b16 %v279
    %v889 = vunpack.c.l.b16 %v280
    %v890 = vunpack.c.h.b16 %v280
    %v891 = vunpack.c.l.b16 %v281
    %v892 = vunpack.c.h.b16 %v281
    %v893 = vunpack.c.l.b16 %v282
    %v894 = vunpack.c.h.b16 %v282
    %v895 = vunpack.c.l.b16 %v283
    %v896 = vunpack.c.h.b16 %v283
    %v897 = vunpack.c.l.b16 %v284
    %v898 = vunpack.c.h.b16 %v284
    %v899 = vunpack.c.l.b16 %v285
    %v900 = vunpack.c.h.b16 %v285
    %v901 = vunpack.c.l.b16 %v286
    %v902 = vunpack.c.h.b16 %v286
    %v903 = vunpack.c.l.b16 %v287
    %v904 = vunpack.c.h.b16 %v287
    %v905 = vunpack.c.l.b16 %v288
    %v906 = vunpack.c.h.b16 %v288
    %v907 = vunpack.c.l.b16 %v289
    %v908 = vunpack.c.h.b16 %v289
    %v909 = vunpack.c.l.b16 %v290
    %v910 = vunpack.c.h.b16 %v290
    %v911 = vunpack.c.l.b16 %v291
    %v912 = vunpack.c.h.b16 %v291
    %v913 = vunpack.c.l.b16 %v292
    %v914 = vunpack.c.h.b16 %v292
    %v915 = vunpack.c.l.b16 %v293
    %v916 = vunpack.c.h.b16 %v293
    %v917 = vunpack.c.l.b16 %v294
    %v918 = vunpack.c.h.b16 %v294
    %v919 = vunpack.c.l.b16 %v295
    %v920 = vunpack.c.h.b16 %v295
    %v921 = vunpack.c.l.b16 %v296
    %v922 = vunpack.c.h.b16 %v296
    %v923 = vunpack.c.l.b16 %v297
    %v924 = vunpack.c.h.b16 %v297
    %v925 = vunpack.c.l.b16 %v298
    %v926 = vunpack.c.h.b16 %v298
    %v927 = vunpack.c.l.b16 %v299
    %v928 = vunpack.c.h.b16 %v299
    %v929 = vunpack.c.l.b16 %v300
    %v930 = vunpack.c.h.b16 %v300
    %v931 = vunpack.c.l.b16 %v301
    %v932 = vunpack.c.h.b16 %v301
    %v933 = vunpack.c.l.b16 %v302
    %v934 = vunpack.c.h.b16 %v302
    %v935 = vunpack.c.l.b16 %v303
    %v936 = vunpack.c.h.b16 %v303
    %v937 = vunpack.c.l.b16 %v304
    %v938 = vunpack.c.h.b16 %v304
    %v939 = vunpack.c.l.b16 %v305
    %v940 = vunpack.c.h.b16 %v305
    %v941 = vunpack.c.l.b16 %v306
    %v942 = vunpack.c.h.b16 %v306
    %v943 = vunpack.c.l.b16 %v307
    %v944 = vunpack.c.h.b16 %v307
    %v945 = vunpack.c.l.b16 %v308
    %v946 = vunpack.c.h.b16 %v308
    %v947 = vunpack.c.l.b16 %v309
    %v948 = vunpack.c.h.b16 %v309
    %v949 = vunpack.c.l.b16 %v310
    %v950 = vunpack.c.h.b16 %v310
    %v951 = vunpack.c.l.b16 %v311
    %v952 = vunpack.c.h.b16 %v311
    %v953 = vunpack.c.l.b16 %v312
    %v954 = vunpack.c.h.b16 %v312
    %v955 = vunpack.c.l.b16 %v313
    %v956 = vunpack.c.h.b16 %v313
    %v957 = vunpack.c.l.b16 %v314
    %v958 = vunpack.c.h.b16 %v314
    %v959 = vunpack.c.l.b16 %v315
    %v960 = vunpack.c.h.b16 %v315
    %v961 = vunpack.c.l.b16 %v316
    %v962 = vunpack.c.h.b16 %v316
    %v963 = vunpack.c.l.b16 %v317
    %v964 = vunpack.c.h.b16 %v317
    %v965 = vunpack.c.l.b16 %v318
    %v966 = vunpack.c.h.b16 %v318
    %v967 = vunpack.c.l.b16 %v319
    %v968 = vunpack.c.h.b16 %v319
    %v969 = vunpack.c.l.b16 %v320
    %v970 = vunpack.c.h.b16 %v320
    %v971 = vunpack.c.l.b16 %v321
    %v972 = vunpack.c.h.b16 %v321
    %v973 = vunpack.c.l.b16 %v322
    %v974 = vunpack.c.h.b16 %v322
    %v975 = vunpack.c.l.b16 %v323
    %v976 = vunpack.c.h.b16 %v323
    %v977 = vunpack.c.l.b16 %v324
    %v978 = vunpack.c.h.b16 %v324
    %v979 = vunpack.c.l.b16 %v325
    %v980 = vunpack.c.h.b16 %v325
    %v981 = vunpack.c.l.b16 %v326
    %v982 = vunpack.c.h.b16 %v326
    %v983 = vunpack.c.l.b16 %v327
    %v984 = vunpack.c.h.b16 %v327
    %v985 = vunpack.c.l.b16 %v328
    %v986 = vunpack.c.h.b16 %v328
    %v987 = vunpack.c.l.b16 %v329
    %v988 = vunpack.c.h.b16 %v329
    %v989 = vunpack.c.l.b16 %v330
    %v990 = vunpack.c.h.b16 %v330
    %v991 = vunpack.c.l.b16 %v331
    %v992 = vunpack.c.h.b16 %v331
    %v993 = vunpack.c.l.b16 %v332
    %v994 = vunpack.c.h.b16 %v332
    %v995 = vunpack.c.l.b16 %v333
    %v996 = vunpack.c.h.b16 %v333
    %v997 = vunpack.c.l.b16 %v334
    %v998 = vunpack.c.h.b16 %v334
    %v999 = vunpack.c.l.b16 %v335
    %v1000 = vunpack.c.h.b16 %v335
    %v1001 = vunpack.c.l.b16 %v336
    %v1002 = vunpack.c.h.b16 %v336
    %v1003 = vunpack.c.l.b16 %v337
    %v1004 = vunpack.c.h.b16 %v337
    %v1005 = vunpack.c.l.b16 %v338
    %v1006 = vunpack.c.h.b16 %v338
    %v1007 = vunpack.c.l.b16 %v339
    %v1008 = vunpack.c.h.b16 %v339
    %v1009 = vunpack.c.l.b16 %v340
    %v1010 = vunpack.c.h.b16 %v340
    %v1011 = vunpack.c.l.b16 %v341
    %v1012 = vunpack.c.h.b16 %v341
    %v1013 = vunpack.c.l.b16 %v342
    %v1014 = vunpack.c.h.b16 %v342
    %v1015 = vunpack.c.l.b16 %v343
    %v1016 = vunpack.c.h.b16 %v343
    %v1017 = vunpack.c.l.b16 %v344
    %v1018 = vunpack.c.h.b16 %v344
    %v1019 = vunpack.c.l.b16 %v345
    %v1020 = vunpack.c.h.b16 %v345
    %v1021 = vunpack.c.l.b16 %v346
    %v1022 = vunpack.c.h.b16 %v346
    %v1023 = vunpack.c.l.b16 %v347
    %v1024 = vunpack.c.h.b16 %v347
    %v1025 = vunpack.c.l.b16 %v348
    %v1026 = vunpack.c.h.b16 %v348
    %v1027 = vunpack.c.l.b16 %v349
    %v1028 = vunpack.c.h.b16 %v349
    %v1029 = vunpack.c.l.b16 %v350
    %v1030 = vunpack.c.h.b16 %v350
    %v1031 = vunpack.c.l.b16 %v351
    %v1032 = vunpack.c.h.b16 %v351
    %v1033 = vunpack.c.l.b16 %v352
    %v1034 = vunpack.c.h.b16 %v352
    %v1035 = vpack.c.b16 %v591, %v587
    %v1036 = vpack.c.b16 %v592, %v588
    %v1037 = vpack.c.b16 %v593, %v589
    %v1038 = vpack.c.b16 %v594, %v590
    %v1039 = vpack.c.b16 %v599, %v595
    %v1040 = vpack.c.b16 %v600, %v596
    %v1041 = vpack.c.b16 %v601, %v597
    %v1042 = vpack.c.b16 %v602, %v598
    %v1043 = vpack.c.b16 %v607, %v603
    %v1044 = vpack.c.b16 %v608, %v604
    %v1045 = vpack.c.b16 %v609, %v605
    %v1046 = vpack.c.b16 %v610, %v606
    %v1047 = vpack.c.b16 %v615, %v611
    %v1048 = vpack.c.b16 %v616, %v612
    %v1049 = vpack.c.b16 %v617, %v613
    %v1050 = vpack.c.b16 %v618, %v614
    %v1051 = vpack.c.b16 %v623, %v619
    %v1052 = vpack.c.b16 %v624, %v620
    %v1053 = vpack.c.b16 %v625, %v621
    %v1054 = vpack.c.b16 %v626, %v622
    %v1055 = vpack.c.b16 %v631, %v627
    %v1056 = vpack.c.b16 %v632, %v628
    %v1057 = vpack.c.b16 %v633, %v629
    %v1058 = vpack.c.b16 %v634, %v630
    %v1059 = vpack.c.b16 %v639, %v635
    %v1060 = vpack.c.b16 %v640, %v636
    %v1061 = vpack.c.b16 %v641, %v637
    %v1062 = vpack.c.b16 %v642, %v638
    %v1063 = vpack.c.b16 %v647, %v643
    %v1064 = vpack.c.b16 %v648, %v644
    %v1065 = vpack.c.b16 %v649, %v645
    %v1066 = vpack.c.b16 %v650, %v646
    %v1067 = vpack.c.b16 %v655, %v651
    %v1068 = vpack.c.b16 %v656, %v652
    %v1069 = vpack.c.b16 %v657, %v653
    %v1070 = vpack.c.b16 %v658, %v654
    %v1071 = vpack.c.b16 %v663, %v659
    %v1072 = vpack.c.b16 %v664, %v660
    %v1073 = vpack.c.b16 %v665, %v661
    %v1074 = vpack.c.b16 %v666, %v662
    %v1075 = vpack.c.b16 %v671, %v667
    %v1076 = vpack.c.b16 %v672, %v668
    %v1077 = vpack.c.b16 %v673, %v669
    %v1078 = vpack.c.b16 %v674, %v670
    %v1079 = vpack.c.b16 %v679, %v675
    %v1080 = vpack.c.b16 %v680, %v676
    %v1081 = vpack.c.b16 %v681, %v677
    %v1082 = vpack.c.b16 %v682, %v678
    %v1083 = vpack.c.b16 %v687, %v683
    %v1084 = vpack.c.b16 %v688, %v684
    %v1085 = vpack.c.b16 %v689, %v685
    %v1086 = vpack.c.b16 %v690, %v686
    %v1087 = vpack.c.b16 %v695, %v691
    %v1088 = vpack.c.b16 %v696, %v692
    %v1089 = vpack.c.b16 %v697, %v693
    %v1090 = vpack.c.b16 %v698, %v694
    %v1091 = vpack.c.b16 %v703, %v699
    %v1092 = vpack.c.b16 %v704, %v700
    %v1093 = vpack.c.b16 %v705, %v701
    %v1094 = vpack.c.b16 %v706, %v702
    %v1095 = vpack.c.b16 %v711, %v707
    %v1096 = vpack.c.b16 %v712, %v708
    %v1097 = vpack.c.b16 %v713, %v709
    %v1098 = vpack.c.b16 %v714, %v710
    %v1099 = vpack.c.b16 %v719, %v715
    %v1100 = vpack.c.b16 %v720, %v716
    %v1101 = vpack.c.b16 %v721, %v717
    %v1102 = vpack.c.b16 %v722, %v718
    %v1103 = vpack.c.b16 %v727, %v723
    %v1104 = vpack.c.b16 %v728, %v724
    %v1105 = vpack.c.b16 %v729, %v725
    %v1106 = vpack.c.b16 %v730, %v726
    %v1107 = vpack.c.b16 %v735, %v731
    %v1108 = vpack.c.b16 %v736, %v732
    %v1109 = vpack.c.b16 %v737, %v733
    %v1110 = vpack.c.b16 %v738, %v734
    %v1111 = vpack.c.b16 %v743, %v739
    %v1112 = vpack.c.b16 %v744, %v740
    %v1113 = vpack.c.b16 %v745, %v741
    %v1114 = vpack.c.b16 %v746, %v742
    %v1115 = vpack.c.b16 %v751, %v747
    %v1116 = vpack.c.b16 %v752, %v748
    %v1117 = vpack.c.b16 %v753, %v749
    %v1118 = vpack.c.b16 %v754, %v750
    %v1119 = vpack.c.b16 %v759, %v755
    %v1120 = vpack.c.b16 %v760, %v756
    %v1121 = vpack.c.b16 %v761, %v757
    %v1122 = vpack.c.b16 %v762, %v758
    %v1123 = vpack.c.b16 %v767, %v763
    %v1124 = vpack.c.b16 %v768, %v764
    %v1125 = vpack.c.b16 %v769, %v765
    %v1126 = vpack.c.b16 %v770, %v766
    %v1127 = vpack.c.b16 %v775, %v771
    %v1128 = vpack.c.b16 %v776, %v772
    %v1129 = vpack.c.b16 %v777, %v773
    %v1130 = vpack.c.b16 %v778, %v774
    %v1131 = vpack.c.b16 %v783, %v779
    %v1132 = vpack.c.b16 %v784, %v780
    %v1133 = vpack.c.b16 %v785, %v781
    %v1134 = vpack.c.b16 %v786, %v782
    %v1135 = vpack.c.b16 %v791, %v787
    %v1136 = vpack.c.b16 %v792, %v788
    %v1137 = vpack.c.b16 %v793, %v789
    %v1138 = vpack.c.b16 %v794, %v790
    %v1139 = vpack.c.b16 %v799, %v795
    %v1140 = vpack.c.b16 %v800, %v796
    %v1141 = vpack.c.b16 %v801, %v797
    %v1142 = vpack.c.b16 %v802, %v798
    %v1143 = vpack.c.b16 %v807, %v803
    %v1144 = vpack.c.b16 %v808, %v804
    %v1145 = vpack.c.b16 %v809, %v805
    %v1146 = vpack.c.b16 %v810, %v806
    %v1147 = vpack.c.b16 %v815, %v811
    %v1148 = vpack.c.b16 %v816, %v812
    %v1149 = vpack.c.b16 %v817, %v813
    %v1150 = vpack.c.b16 %v818, %v814
    %v1151 = vpack.c.b16 %v823, %v819
    %v1152 = vpack.c.b16 %v824, %v820
    %v1153 = vpack.c.b16 %v825, %v821
    %v1154 = vpack.c.b16 %v826, %v822
    %v1155 = vpack.c.b16 %v831, %v827
    %v1156 = vpack.c.b16 %v832, %v828
    %v1157 = vpack.c.b16 %v833, %v829
    %v1158 = vpack.c.b16 %v834, %v830
    %v1159 = vpack.c.b16 %v839, %v835
    %v1160 = vpack.c.b16 %v840, %v836
    %v1161 = vpack.c.b16 %v841, %v837
    %v1162 = vpack.c.b16 %v842, %v838
    %v1163 = vpack.c.b16 %v847, %v843
    %v1164 = vpack.c.b16 %v848, %v844
    %v1165 = vpack.c.b16 %v849, %v845
    %v1166 = vpack.c.b16 %v850, %v846
    %v1167 = vpack.c.b16 %v855, %v851
    %v1168 = vpack.c.b16 %v856, %v852
    %v1169 = vpack.c.b16 %v857, %v853
    %v1170 = vpack.c.b16 %v858, %v854
    %v1171 = vpack.c.b16 %v863, %v859
    %v1172 = vpack.c.b16 %v864, %v860
    %v1173 = vpack.c.b16 %v865, %v861
    %v1174 = vpack.c.b16 %v866, %v862
    %v1175 = vpack.c.b16 %v871, %v867
    %v1176 = vpack.c.b16 %v872, %v868
    %v1177 = vpack.c.b16 %v873, %v869
    %v1178 = vpack.c.b16 %v874, %v870
    %v1179 = vpack.c.b16 %v879, %v875
    %v1180 = vpack.c.b16 %v880, %v876
    %v1181 = vpack.c.b16 %v881, %v877
    %v1182 = vpack.c.b16 %v882, %v878
    %v1183 = vpack.c.b16 %v887, %v883
    %v1184 = vpack.c.b16 %v888, %v884
    %v1185 = vpack.c.b16 %v889, %v885
    %v1186 = vpack.c.b16 %v890, %v886
    %v1187 = vpack.c.b16 %v895, %v891
    %v1188 = vpack.c.b16 %v896, %v892
    %v1189 = vpack.c.b16 %v897, %v893
    %v1190 = vpack.c.b16 %v898, %v894
    %v1191 = vpack.c.b16 %v903, %v899
    %v1192 = vpack.c.b16 %v904, %v900
    %v1193 = vpack.c.b16 %v905, %v901
    %v1194 = vpack.c.b16 %v906, %v902
    %v1195 = vpack.c.b16 %v911, %v907
    %v1196 = vpack.c.b16 %v912, %v908
    %v1197 = vpack.c.b16 %v913, %v909
    %v1198 = vpack.c.b16 %v914, %v910
    %v1199 = vpack.c.b16 %v919, %v915
    %v1200 = vpack.c.b16 %v920, %v916
    %v1201 = vpack.c.b16 %v921, %v917
    %v1202 = vpack.c.b16 %v922, %v918
    %v1203 = vpack.c.b16 %v927, %v923
    %v1204 = vpack.c.b16 %v928, %v924
    %v1205 = vpack.c.b16 %v929, %v925
    %v1206 = vpack.c.b16 %v930, %v926
    %v1207 = vpack.c.b16 %v935, %v931
    %v1208 = vpack.c.b16 %v936, %v932
    %v1209 = vpack.c.b16 %v937, %v933
    %v1210 = vpack.c.b16 %v938, %v934
    %v1211 = vpack.c.b16 %v943, %v939
    %v1212 = vpack.c.b16 %v944, %v940
    %v1213 = vpack.c.b16 %v945, %v941
    %v1214 = vpack.c.b16 %v946, %v942
    %v1215 = vpack.c.b16 %v951, %v947
    %v1216 = vpack.c.b16 %v952, %v948
    %v1217 = vpack.c.b16 %v953, %v949
    %v1218 = vpack.c.b16 %v954, %v950
    %v1219 = vpack.c.b16 %v959, %v955
    %v1220 = vpack.c.b16 %v960, %v956
    %v1221 = vpack.c.b16 %v961, %v957
    %v1222 = vpack.c.b16 %v962, %v958
    %v1223 = vpack.c.b16 %v967, %v963
    %v1224 = vpack.c.b16 %v968, %v964
    %v1225 = vpack.c.b16 %v969, %v965
    %v1226 = vpack.c.b16 %v970, %v966
    %v1227 = vpack.c.b16 %v975, %v971
    %v1228 = vpack.c.b16 %v976, %v972
    %v1229 = vpack.c.b16 %v977, %v973
    %v1230 = vpack.c.b16 %v978, %v974
    %v1231 = vpack.c.b16 %v983, %v979
    %v1232 = vpack.c.b16 %v984, %v980
    %v1233 = vpack.c.b16 %v985, %v981
    %v1234 = vpack.c.b16 %v986, %v982
    %v1235 = vpack.c.b16 %v991, %v987
    %v1236 = vpack.c.b16 %v992, %v988
    %v1237 = vpack.c.b16 %v993, %v989
    %v1238 = vpack.c.b16 %v994, %v990
    %v1239 = vpack.c.b16 %v999, %v995
    %v1240 = vpack.c.b16 %v1000, %v996
    %v1241 = vpack.c.b16 %v1001, %v997
    %v1242 = vpack.c.b16 %v1002, %v998
    %v1243 = vpack.c.b16 %v1007, %v1003
    %v1244 = vpack.c.b16 %v1008, %v1004
    %v1245 = vpack.c.b16 %v1009, %v1005
    %v1246 = vpack.c.b16 %v1010, %v1006
    %v1247 = vpack.c.b16 %v1015, %v1011
    %v1248 = vpack.c.b16 %v1016, %v1012
    %v1249 = vpack.c.b16 %v1017, %v1013
    %v1250 = vpack.c.b16 %v1018, %v1014
    %v1251 = vpack.c.b16 %v1023, %v1019
    %v1252 = vpack.c.b16 %v1024, %v1020
    %v1253 = vpack.c.b16 %v1025, %v1021
    %v1254 = vpack.c.b16 %v1026, %v1022
    %v1255 = vpack.c.b16 %v1031, %v1027
    %v1256 = vpack.c.b16 %v1032, %v1028
    %v1257 = vpack.c.b16 %v1033, %v1029
    %v1258 = vpack.c.b16 %v1034, %v1030
    %1483 = vmatpush.bf16.msra.mxu0 %v1063
    %1484 = vmatpush.bf16.msra.mxu0 %v1059
    %1485 = vmatpush.bf16.msra.mxu0 %v1055
    %1486 = vmatpush.bf16.msra.mxu0 %v1051
    %1487 = vmatpush.bf16.msra.mxu0 %v1047
    %1488 = vmatpush.bf16.msra.mxu0 %v1043
    %1489 = vmatpush.bf16.msra.mxu0 %v1039
    %1490 = vmatpush.bf16.msra.mxu0 %v1035
    %1491 = vmatmul.bf16.gmra.mxu0 %v122
    %v1492 = vpop.f32.mrf.mxu0
    %v1493 = vadd.f32 %v355, %v1492
    %v1494 = vpop.f32.mrf.mxu0
    %1495 = vdwg.mxu0
    %1496 = vmatpush.bf16.msra.mxu0 %v1095
    %1497 = vmatpush.bf16.msra.mxu0 %v1091
    %1498 = vmatpush.bf16.msra.mxu0 %v1087
    %1499 = vmatpush.bf16.msra.mxu0 %v1083
    %1500 = vmatpush.bf16.msra.mxu0 %v1079
    %1501 = vmatpush.bf16.msra.mxu0 %v1075
    %1502 = vmatpush.bf16.msra.mxu0 %v1071
    %1503 = vmatpush.bf16.msra.mxu0 %v1067
    %1504 = vmatmul.bf16.gmra.mxu0 %v123
    %v1505 = vpop.f32.mrf.mxu0
    %v1506 = vadd.f32 %v1493, %v1505
    %v1507 = vpop.f32.mrf.mxu0
    %1508 = vdwg.mxu0
    %1509 = vmatpush.bf16.msra.mxu0 %v1127
    %1510 = vmatpush.bf16.msra.mxu0 %v1123
    %1511 = vmatpush.bf16.msra.mxu0 %v1119
    %1512 = vmatpush.bf16.msra.mxu0 %v1115
    %1513 = vmatpush.bf16.msra.mxu0 %v1111
    %1514 = vmatpush.bf16.msra.mxu0 %v1107
    %1515 = vmatpush.bf16.msra.mxu0 %v1103
    %1516 = vmatpush.bf16.msra.mxu0 %v1099
    %1517 = vmatmul.bf16.gmra.mxu0 %v124
    %v1518 = vpop.f32.mrf.mxu0
    %v1519 = vadd.f32 %v1506, %v1518
    %v1520 = vpop.f32.mrf.mxu0
    %1521 = vdwg.mxu0
    %1522 = vmatpush.bf16.msra.mxu0 %v1159
    %1523 = vmatpush.bf16.msra.mxu0 %v1155
    %1524 = vmatpush.bf16.msra.mxu0 %v1151
    %1525 = vmatpush.bf16.msra.mxu0 %v1147
    %1526 = vmatpush.bf16.msra.mxu0 %v1143
    %1527 = vmatpush.bf16.msra.mxu0 %v1139
    %1528 = vmatpush.bf16.msra.mxu0 %v1135
    %1529 = vmatpush.bf16.msra.mxu0 %v1131
    %1530 = vmatmul.bf16.gmra.mxu0 %v125
    %v1531 = vpop.f32.mrf.mxu0
    %v1532 = vadd.f32 %v1519, %v1531
    %v1533 = vpop.f32.mrf.mxu0
    %1534 = vdwg.mxu0
    %1535 = vmatpush.bf16.msra.mxu0 %v1191
    %1536 = vmatpush.bf16.msra.mxu0 %v1187
    %1537 = vmatpush.bf16.msra.mxu0 %v1183
    %1538 = vmatpush.bf16.msra.mxu0 %v1179
    %1539 = vmatpush.bf16.msra.mxu0 %v1175
    %1540 = vmatpush.bf16.msra.mxu0 %v1171
    %1541 = vmatpush.bf16.msra.mxu0 %v1167
    %1542 = vmatpush.bf16.msra.mxu0 %v1163
    %1543 = vmatmul.bf16.gmra.mxu0 %v126
    %v1544 = vpop.f32.mrf.mxu0
    %v1545 = vadd.f32 %v1532, %v1544
    %v1546 = vpop.f32.mrf.mxu0
    %1547 = vdwg.mxu0
    %1548 = vmatpush.bf16.msra.mxu0 %v1223
    %1549 = vmatpush.bf16.msra.mxu0 %v1219
    %1550 = vmatpush.bf16.msra.mxu0 %v1215
    %1551 = vmatpush.bf16.msra.mxu0 %v1211
    %1552 = vmatpush.bf16.msra.mxu0 %v1207
    %1553 = vmatpush.bf16.msra.mxu0 %v1203
    %1554 = vmatpush.bf16.msra.mxu0 %v1199
    %1555 = vmatpush.bf16.msra.mxu0 %v1195
    %1556 = vmatmul.bf16.gmra.mxu0 %v127
    %v1557 = vpop.f32.mrf.mxu0
    %v1558 = vadd.f32 %v1545, %v1557
    %v1559 = vpop.f32.mrf.mxu0
    %1560 = vdwg.mxu0
    %1561 = vmatpush.bf16.msra.mxu0 %v1255
    %1562 = vmatpush.bf16.msra.mxu0 %v1251
    %1563 = vmatpush.bf16.msra.mxu0 %v1247
    %1564 = vmatpush.bf16.msra.mxu0 %v1243
    %1565 = vmatpush.bf16.msra.mxu0 %v1239
    %1566 = vmatpush.bf16.msra.mxu0 %v1235
    %1567 = vmatpush.bf16.msra.mxu0 %v1231
    %1568 = vmatpush.bf16.msra.mxu0 %v1227
    %1569 = vmatmul.bf16.gmra.mxu0 %v128
    %v1570 = vpop.f32.mrf.mxu0
    %v1571 = vadd.f32 %v1558, %v1570
    %v1572 = vpop.f32.mrf.mxu0
    %1573 = vdwg.mxu0
    %1574 = vmatpush.bf16.msra.mxu0 %v1064
    %1575 = vmatpush.bf16.msra.mxu0 %v1060
    %1576 = vmatpush.bf16.msra.mxu0 %v1056
    %1577 = vmatpush.bf16.msra.mxu0 %v1052
    %1578 = vmatpush.bf16.msra.mxu0 %v1048
    %1579 = vmatpush.bf16.msra.mxu0 %v1044
    %1580 = vmatpush.bf16.msra.mxu0 %v1040
    %1581 = vmatpush.bf16.msra.mxu0 %v1036
    %1582 = vmatmul.bf16.gmra.mxu0 %v122
    %v1583 = vpop.f32.mrf.mxu0
    %v1584 = vadd.f32 %v356, %v1583
    %v1585 = vpop.f32.mrf.mxu0
    %1586 = vdwg.mxu0
    %1587 = vmatpush.bf16.msra.mxu0 %v1096
    %1588 = vmatpush.bf16.msra.mxu0 %v1092
    %1589 = vmatpush.bf16.msra.mxu0 %v1088
    %1590 = vmatpush.bf16.msra.mxu0 %v1084
    %1591 = vmatpush.bf16.msra.mxu0 %v1080
    %1592 = vmatpush.bf16.msra.mxu0 %v1076
    %1593 = vmatpush.bf16.msra.mxu0 %v1072
    %1594 = vmatpush.bf16.msra.mxu0 %v1068
    %1595 = vmatmul.bf16.gmra.mxu0 %v123
    %v1596 = vpop.f32.mrf.mxu0
    %v1597 = vadd.f32 %v1584, %v1596
    %v1598 = vpop.f32.mrf.mxu0
    %1599 = vdwg.mxu0
    %1600 = vmatpush.bf16.msra.mxu0 %v1128
    %1601 = vmatpush.bf16.msra.mxu0 %v1124
    %1602 = vmatpush.bf16.msra.mxu0 %v1120
    %1603 = vmatpush.bf16.msra.mxu0 %v1116
    %1604 = vmatpush.bf16.msra.mxu0 %v1112
    %1605 = vmatpush.bf16.msra.mxu0 %v1108
    %1606 = vmatpush.bf16.msra.mxu0 %v1104
    %1607 = vmatpush.bf16.msra.mxu0 %v1100
    %1608 = vmatmul.bf16.gmra.mxu0 %v124
    %v1609 = vpop.f32.mrf.mxu0
    %v1610 = vadd.f32 %v1597, %v1609
    %v1611 = vpop.f32.mrf.mxu0
    %1612 = vdwg.mxu0
    %1613 = vmatpush.bf16.msra.mxu0 %v1160
    %1614 = vmatpush.bf16.msra.mxu0 %v1156
    %1615 = vmatpush.bf16.msra.mxu0 %v1152
    %1616 = vmatpush.bf16.msra.mxu0 %v1148
    %1617 = vmatpush.bf16.msra.mxu0 %v1144
    %1618 = vmatpush.bf16.msra.mxu0 %v1140
    %1619 = vmatpush.bf16.msra.mxu0 %v1136
    %1620 = vmatpush.bf16.msra.mxu0 %v1132
    %1621 = vmatmul.bf16.gmra.mxu0 %v125
    %v1622 = vpop.f32.mrf.mxu0
    %v1623 = vadd.f32 %v1610, %v1622
    %v1624 = vpop.f32.mrf.mxu0
    %1625 = vdwg.mxu0
    %1626 = vmatpush.bf16.msra.mxu0 %v1192
    %1627 = vmatpush.bf16.msra.mxu0 %v1188
    %1628 = vmatpush.bf16.msra.mxu0 %v1184
    %1629 = vmatpush.bf16.msra.mxu0 %v1180
    %1630 = vmatpush.bf16.msra.mxu0 %v1176
    %1631 = vmatpush.bf16.msra.mxu0 %v1172
    %1632 = vmatpush.bf16.msra.mxu0 %v1168
    %1633 = vmatpush.bf16.msra.mxu0 %v1164
    %1634 = vmatmul.bf16.gmra.mxu0 %v126
    %v1635 = vpop.f32.mrf.mxu0
    %v1636 = vadd.f32 %v1623, %v1635
    %v1637 = vpop.f32.mrf.mxu0
    %1638 = vdwg.mxu0
    %1639 = vmatpush.bf16.msra.mxu0 %v1224
    %1640 = vmatpush.bf16.msra.mxu0 %v1220
    %1641 = vmatpush.bf16.msra.mxu0 %v1216
    %1642 = vmatpush.bf16.msra.mxu0 %v1212
    %1643 = vmatpush.bf16.msra.mxu0 %v1208
    %1644 = vmatpush.bf16.msra.mxu0 %v1204
    %1645 = vmatpush.bf16.msra.mxu0 %v1200
    %1646 = vmatpush.bf16.msra.mxu0 %v1196
    %1647 = vmatmul.bf16.gmra.mxu0 %v127
    %v1648 = vpop.f32.mrf.mxu0
    %v1649 = vadd.f32 %v1636, %v1648
    %v1650 = vpop.f32.mrf.mxu0
    %1651 = vdwg.mxu0
    %1652 = vmatpush.bf16.msra.mxu0 %v1256
    %1653 = vmatpush.bf16.msra.mxu0 %v1252
    %1654 = vmatpush.bf16.msra.mxu0 %v1248
    %1655 = vmatpush.bf16.msra.mxu0 %v1244
    %1656 = vmatpush.bf16.msra.mxu0 %v1240
    %1657 = vmatpush.bf16.msra.mxu0 %v1236
    %1658 = vmatpush.bf16.msra.mxu0 %v1232
    %1659 = vmatpush.bf16.msra.mxu0 %v1228
    %1660 = vmatmul.bf16.gmra.mxu0 %v128
    %v1661 = vpop.f32.mrf.mxu0
    %v1662 = vadd.f32 %v1649, %v1661
    %v1663 = vpop.f32.mrf.mxu0
    %1664 = vdwg.mxu0
    %1665 = vmatpush.bf16.msra.mxu0 %v1065
    %1666 = vmatpush.bf16.msra.mxu0 %v1061
    %1667 = vmatpush.bf16.msra.mxu0 %v1057
    %1668 = vmatpush.bf16.msra.mxu0 %v1053
    %1669 = vmatpush.bf16.msra.mxu0 %v1049
    %1670 = vmatpush.bf16.msra.mxu0 %v1045
    %1671 = vmatpush.bf16.msra.mxu0 %v1041
    %1672 = vmatpush.bf16.msra.mxu0 %v1037
    %1673 = vmatmul.bf16.gmra.mxu0 %v122
    %v1674 = vpop.f32.mrf.mxu0
    %v1675 = vadd.f32 %v357, %v1674
    %v1676 = vpop.f32.mrf.mxu0
    %1677 = vdwg.mxu0
    %1678 = vmatpush.bf16.msra.mxu0 %v1097
    %1679 = vmatpush.bf16.msra.mxu0 %v1093
    %1680 = vmatpush.bf16.msra.mxu0 %v1089
    %1681 = vmatpush.bf16.msra.mxu0 %v1085
    %1682 = vmatpush.bf16.msra.mxu0 %v1081
    %1683 = vmatpush.bf16.msra.mxu0 %v1077
    %1684 = vmatpush.bf16.msra.mxu0 %v1073
    %1685 = vmatpush.bf16.msra.mxu0 %v1069
    %1686 = vmatmul.bf16.gmra.mxu0 %v123
    %v1687 = vpop.f32.mrf.mxu0
    %v1688 = vadd.f32 %v1675, %v1687
    %v1689 = vpop.f32.mrf.mxu0
    %1690 = vdwg.mxu0
    %1691 = vmatpush.bf16.msra.mxu0 %v1129
    %1692 = vmatpush.bf16.msra.mxu0 %v1125
    %1693 = vmatpush.bf16.msra.mxu0 %v1121
    %1694 = vmatpush.bf16.msra.mxu0 %v1117
    %1695 = vmatpush.bf16.msra.mxu0 %v1113
    %1696 = vmatpush.bf16.msra.mxu0 %v1109
    %1697 = vmatpush.bf16.msra.mxu0 %v1105
    %1698 = vmatpush.bf16.msra.mxu0 %v1101
    %1699 = vmatmul.bf16.gmra.mxu0 %v124
    %v1700 = vpop.f32.mrf.mxu0
    %v1701 = vadd.f32 %v1688, %v1700
    %v1702 = vpop.f32.mrf.mxu0
    %1703 = vdwg.mxu0
    %1704 = vmatpush.bf16.msra.mxu0 %v1161
    %1705 = vmatpush.bf16.msra.mxu0 %v1157
    %1706 = vmatpush.bf16.msra.mxu0 %v1153
    %1707 = vmatpush.bf16.msra.mxu0 %v1149
    %1708 = vmatpush.bf16.msra.mxu0 %v1145
    %1709 = vmatpush.bf16.msra.mxu0 %v1141
    %1710 = vmatpush.bf16.msra.mxu0 %v1137
    %1711 = vmatpush.bf16.msra.mxu0 %v1133
    %1712 = vmatmul.bf16.gmra.mxu0 %v125
    %v1713 = vpop.f32.mrf.mxu0
    %v1714 = vadd.f32 %v1701, %v1713
    %v1715 = vpop.f32.mrf.mxu0
    %1716 = vdwg.mxu0
    %1717 = vmatpush.bf16.msra.mxu0 %v1193
    %1718 = vmatpush.bf16.msra.mxu0 %v1189
    %1719 = vmatpush.bf16.msra.mxu0 %v1185
    %1720 = vmatpush.bf16.msra.mxu0 %v1181
    %1721 = vmatpush.bf16.msra.mxu0 %v1177
    %1722 = vmatpush.bf16.msra.mxu0 %v1173
    %1723 = vmatpush.bf16.msra.mxu0 %v1169
    %1724 = vmatpush.bf16.msra.mxu0 %v1165
    %1725 = vmatmul.bf16.gmra.mxu0 %v126
    %v1726 = vpop.f32.mrf.mxu0
    %v1727 = vadd.f32 %v1714, %v1726
    %v1728 = vpop.f32.mrf.mxu0
    %1729 = vdwg.mxu0
    %1730 = vmatpush.bf16.msra.mxu0 %v1225
    %1731 = vmatpush.bf16.msra.mxu0 %v1221
    %1732 = vmatpush.bf16.msra.mxu0 %v1217
    %1733 = vmatpush.bf16.msra.mxu0 %v1213
    %1734 = vmatpush.bf16.msra.mxu0 %v1209
    %1735 = vmatpush.bf16.msra.mxu0 %v1205
    %1736 = vmatpush.bf16.msra.mxu0 %v1201
    %1737 = vmatpush.bf16.msra.mxu0 %v1197
    %1738 = vmatmul.bf16.gmra.mxu0 %v127
    %v1739 = vpop.f32.mrf.mxu0
    %v1740 = vadd.f32 %v1727, %v1739
    %v1741 = vpop.f32.mrf.mxu0
    %1742 = vdwg.mxu0
    %1743 = vmatpush.bf16.msra.mxu0 %v1257
    %1744 = vmatpush.bf16.msra.mxu0 %v1253
    %1745 = vmatpush.bf16.msra.mxu0 %v1249
    %1746 = vmatpush.bf16.msra.mxu0 %v1245
    %1747 = vmatpush.bf16.msra.mxu0 %v1241
    %1748 = vmatpush.bf16.msra.mxu0 %v1237
    %1749 = vmatpush.bf16.msra.mxu0 %v1233
    %1750 = vmatpush.bf16.msra.mxu0 %v1229
    %1751 = vmatmul.bf16.gmra.mxu0 %v128
    %v1752 = vpop.f32.mrf.mxu0
    %v1753 = vadd.f32 %v1740, %v1752
    %v1754 = vpop.f32.mrf.mxu0
    %1755 = vdwg.mxu0
    %1756 = vmatpush.bf16.msra.mxu0 %v1066
    %1757 = vmatpush.bf16.msra.mxu0 %v1062
    %1758 = vmatpush.bf16.msra.mxu0 %v1058
    %1759 = vmatpush.bf16.msra.mxu0 %v1054
    %1760 = vmatpush.bf16.msra.mxu0 %v1050
    %1761 = vmatpush.bf16.msra.mxu0 %v1046
    %1762 = vmatpush.bf16.msra.mxu0 %v1042
    %1763 = vmatpush.bf16.msra.mxu0 %v1038
    %1764 = vmatmul.bf16.gmra.mxu0 %v122
    %v1765 = vpop.f32.mrf.mxu0
    %v1766 = vadd.f32 %v358, %v1765
    %v1767 = vpop.f32.mrf.mxu0
    %1768 = vdwg.mxu0
    %1769 = vmatpush.bf16.msra.mxu0 %v1098
    %1770 = vmatpush.bf16.msra.mxu0 %v1094
    %1771 = vmatpush.bf16.msra.mxu0 %v1090
    %1772 = vmatpush.bf16.msra.mxu0 %v1086
    %1773 = vmatpush.bf16.msra.mxu0 %v1082
    %1774 = vmatpush.bf16.msra.mxu0 %v1078
    %1775 = vmatpush.bf16.msra.mxu0 %v1074
    %1776 = vmatpush.bf16.msra.mxu0 %v1070
    %1777 = vmatmul.bf16.gmra.mxu0 %v123
    %v1778 = vpop.f32.mrf.mxu0
    %v1779 = vadd.f32 %v1766, %v1778
    %v1780 = vpop.f32.mrf.mxu0
    %1781 = vdwg.mxu0
    %1782 = vmatpush.bf16.msra.mxu0 %v1130
    %1783 = vmatpush.bf16.msra.mxu0 %v1126
    %1784 = vmatpush.bf16.msra.mxu0 %v1122
    %1785 = vmatpush.bf16.msra.mxu0 %v1118
    %1786 = vmatpush.bf16.msra.mxu0 %v1114
    %1787 = vmatpush.bf16.msra.mxu0 %v1110
    %1788 = vmatpush.bf16.msra.mxu0 %v1106
    %1789 = vmatpush.bf16.msra.mxu0 %v1102
    %1790 = vmatmul.bf16.gmra.mxu0 %v124
    %v1791 = vpop.f32.mrf.mxu0
    %v1792 = vadd.f32 %v1779, %v1791
    %v1793 = vpop.f32.mrf.mxu0
    %1794 = vdwg.mxu0
    %1795 = vmatpush.bf16.msra.mxu0 %v1162
    %1796 = vmatpush.bf16.msra.mxu0 %v1158
    %1797 = vmatpush.bf16.msra.mxu0 %v1154
    %1798 = vmatpush.bf16.msra.mxu0 %v1150
    %1799 = vmatpush.bf16.msra.mxu0 %v1146
    %1800 = vmatpush.bf16.msra.mxu0 %v1142
    %1801 = vmatpush.bf16.msra.mxu0 %v1138
    %1802 = vmatpush.bf16.msra.mxu0 %v1134
    %1803 = vmatmul.bf16.gmra.mxu0 %v125
    %v1804 = vpop.f32.mrf.mxu0
    %v1805 = vadd.f32 %v1792, %v1804
    %v1806 = vpop.f32.mrf.mxu0
    %1807 = vdwg.mxu0
    %1808 = vmatpush.bf16.msra.mxu0 %v1194
    %1809 = vmatpush.bf16.msra.mxu0 %v1190
    %1810 = vmatpush.bf16.msra.mxu0 %v1186
    %1811 = vmatpush.bf16.msra.mxu0 %v1182
    %1812 = vmatpush.bf16.msra.mxu0 %v1178
    %1813 = vmatpush.bf16.msra.mxu0 %v1174
    %1814 = vmatpush.bf16.msra.mxu0 %v1170
    %1815 = vmatpush.bf16.msra.mxu0 %v1166
    %1816 = vmatmul.bf16.gmra.mxu0 %v126
    %v1817 = vpop.f32.mrf.mxu0
    %v1818 = vadd.f32 %v1805, %v1817
    %v1819 = vpop.f32.mrf.mxu0
    %1820 = vdwg.mxu0
    %1821 = vmatpush.bf16.msra.mxu0 %v1226
    %1822 = vmatpush.bf16.msra.mxu0 %v1222
    %1823 = vmatpush.bf16.msra.mxu0 %v1218
    %1824 = vmatpush.bf16.msra.mxu0 %v1214
    %1825 = vmatpush.bf16.msra.mxu0 %v1210
    %1826 = vmatpush.bf16.msra.mxu0 %v1206
    %1827 = vmatpush.bf16.msra.mxu0 %v1202
    %1828 = vmatpush.bf16.msra.mxu0 %v1198
    %1829 = vmatmul.bf16.gmra.mxu0 %v127
    %v1830 = vpop.f32.mrf.mxu0
    %v1831 = vadd.f32 %v1818, %v1830
    %v1832 = vpop.f32.mrf.mxu0
    %1833 = vdwg.mxu0
    %1834 = vmatpush.bf16.msra.mxu0 %v1258
    %1835 = vmatpush.bf16.msra.mxu0 %v1254
    %1836 = vmatpush.bf16.msra.mxu0 %v1250
    %1837 = vmatpush.bf16.msra.mxu0 %v1246
    %1838 = vmatpush.bf16.msra.mxu0 %v1242
    %1839 = vmatpush.bf16.msra.mxu0 %v1238
    %1840 = vmatpush.bf16.msra.mxu0 %v1234
    %1841 = vmatpush.bf16.msra.mxu0 %v1230
    %1842 = vmatmul.bf16.gmra.mxu0 %v128
    %v1843 = vpop.f32.mrf.mxu0
    %v1844 = vadd.f32 %v1831, %v1843
    %v1845 = vpop.f32.mrf.mxu0
    %1846 = vdwg.mxu0
    %v1847 = vsub.f32 0.0, %v1571
    %v1848 = vsub.f32 0.0, %v1662
    %v1849 = vsub.f32 0.0, %v1753
    %v1850 = vsub.f32 0.0, %v1844
    %v1851 = vmul.f32 %v1847, 1.442695
    %v1852 = vpow.pop %v1851
    %v1853 = vmul.f32 %v1848, 1.442695
    %v1854 = vpow.pop %v1853
    %v1855 = vmul.f32 %v1849, 1.442695
    %v1856 = vpow.pop %v1855
    %v1857 = vmul.f32 %v1850, 1.442695
    %v1858 = vpow.pop %v1857
    %v1859 = vadd.f32 %v1852, 1.0
    %v1860 = vadd.f32 %v1854, 1.0
    %v1861 = vadd.f32 %v1856, 1.0
    %v1862 = vadd.f32 %v1858, 1.0
    %v1863 = vrcp.pop %v1859
    %v1864 = vrcp.pop %v1860
    %v1865 = vrcp.pop %v1861
    %v1866 = vrcp.pop %v1862
    %v1867 = vmul.f32 %v1571, %v1863
    %v1868 = vmul.f32 %v1662, %v1864
    %v1869 = vmul.f32 %v1753, %v1865
    %v1870 = vmul.f32 %v1844, %v1866
    %v1871 = vpack.c.bf16 %v1867, %v1867
    %v1872 = vpack.c.bf16 %v1868, %v1868
    %v1873 = vpack.c.bf16 %v1869, %v1869
    %v1874 = vpack.c.bf16 %v1870, %v1870
    %v1875 = vld [vmem:[#allocation8] sm:$0xff]
    %v1876 = vld [vmem:[#allocation8 + $0x8] sm:$0xff]
    %v1877 = vld [vmem:[#allocation8 + $0x10] sm:$0xff]
    %v1878 = vld [vmem:[#allocation8 + $0x18] sm:$0xff]
    %v1879 = vld [vmem:[#allocation8 + $0x20] sm:$0xff]
    %v1880 = vld [vmem:[#allocation8 + $0x28] sm:$0xff]
    %v1881 = vld [vmem:[#allocation8 + $0x30] sm:$0xff]
    %v1882 = vld [vmem:[#allocation8 + $0x38] sm:$0xff]
    %v1883 = vld [vmem:[#allocation8 + $0x40] sm:$0xff]
    %v1884 = vld [vmem:[#allocation8 + $0x48] sm:$0xff]
    %v1885 = vld [vmem:[#allocation8 + $0x50] sm:$0xff]
    %v1886 = vld [vmem:[#allocation8 + $0x58] sm:$0xff]
    %v1887 = vld [vmem:[#allocation8 + $0x60] sm:$0xff]
    %v1888 = vld [vmem:[#allocation8 + $0x68] sm:$0xff]
    %v1889 = vld [vmem:[#allocation8 + $0x70] sm:$0xff]
    %v1890 = vld [vmem:[#allocation8 + $0x78] sm:$0xff]
    %v1891 = vld [vmem:[#allocation8 + $0x80] sm:$0xff]
    %v1892 = vld [vmem:[#allocation8 + $0x88] sm:$0xff]
    %v1893 = vld [vmem:[#allocation8 + $0x90] sm:$0xff]
    %v1894 = vld [vmem:[#allocation8 + $0x98] sm:$0xff]
    %v1895 = vld [vmem:[#allocation8 + $0xa0] sm:$0xff]
    %v1896 = vld [vmem:[#allocation8 + $0xa8] sm:$0xff]
    %v1897 = vld [vmem:[#allocation8 + $0xb0] sm:$0xff]
    %v1898 = vld [vmem:[#allocation8 + $0xb8] sm:$0xff]
    %v1899 = vld [vmem:[#allocation8 + $0xc0] sm:$0xff]
    %v1900 = vld [vmem:[#allocation8 + $0xc8] sm:$0xff]
    %v1901 = vld [vmem:[#allocation8 + $0xd0] sm:$0xff]
    %v1902 = vld [vmem:[#allocation8 + $0xd8] sm:$0xff]
    %v1903 = vld [vmem:[#allocation8 + $0xe0] sm:$0xff]
    %v1904 = vld [vmem:[#allocation8 + $0xe8] sm:$0xff]
    %v1905 = vld [vmem:[#allocation8 + $0xf0] sm:$0xff]
    %v1906 = vld [vmem:[#allocation8 + $0xf8] sm:$0xff]
    %v1907 = vld [vmem:[#allocation8 + $0x100] sm:$0xff]
    %v1908 = vld [vmem:[#allocation8 + $0x108] sm:$0xff]
    %v1909 = vld [vmem:[#allocation8 + $0x110] sm:$0xff]
    %v1910 = vld [vmem:[#allocation8 + $0x118] sm:$0xff]
    %v1911 = vld [vmem:[#allocation8 + $0x120] sm:$0xff]
    %v1912 = vld [vmem:[#allocation8 + $0x128] sm:$0xff]
    %v1913 = vld [vmem:[#allocation8 + $0x130] sm:$0xff]
    %v1914 = vld [vmem:[#allocation8 + $0x138] sm:$0xff]
    %v1915 = vld [vmem:[#allocation8 + $0x140] sm:$0xff]
    %v1916 = vld [vmem:[#allocation8 + $0x148] sm:$0xff]
    %v1917 = vld [vmem:[#allocation8 + $0x150] sm:$0xff]
    %v1918 = vld [vmem:[#allocation8 + $0x158] sm:$0xff]
    %v1919 = vld [vmem:[#allocation8 + $0x160] sm:$0xff]
    %v1920 = vld [vmem:[#allocation8 + $0x168] sm:$0xff]
    %v1921 = vld [vmem:[#allocation8 + $0x170] sm:$0xff]
    %v1922 = vld [vmem:[#allocation8 + $0x178] sm:$0xff]
    %v1923 = vld [vmem:[#allocation8 + $0x180] sm:$0xff]
    %v1924 = vld [vmem:[#allocation8 + $0x188] sm:$0xff]
    %v1925 = vld [vmem:[#allocation8 + $0x190] sm:$0xff]
    %v1926 = vld [vmem:[#allocation8 + $0x198] sm:$0xff]
    %v1927 = vld [vmem:[#allocation8 + $0x1a0] sm:$0xff]
    %v1928 = vld [vmem:[#allocation8 + $0x1a8] sm:$0xff]
    %v1929 = vld [vmem:[#allocation8 + $0x1b0] sm:$0xff]
    %v1930 = vld [vmem:[#allocation8 + $0x1b8] sm:$0xff]
    %v1931 = vld [vmem:[#allocation8 + $0x1c0] sm:$0xff]
    %v1932 = vld [vmem:[#allocation8 + $0x1c8] sm:$0xff]
    %v1933 = vld [vmem:[#allocation8 + $0x1d0] sm:$0xff]
    %v1934 = vld [vmem:[#allocation8 + $0x1d8] sm:$0xff]
    %v1935 = vld [vmem:[#allocation8 + $0x1e0] sm:$0xff]
    %v1936 = vld [vmem:[#allocation8 + $0x1e8] sm:$0xff]
    %v1937 = vld [vmem:[#allocation8 + $0x1f0] sm:$0xff]
    %v1938 = vld [vmem:[#allocation8 + $0x1f8] sm:$0xff]
    %v1939 = vld [vmem:[#allocation8 + $0x200] sm:$0xff]
    %v1940 = vld [vmem:[#allocation8 + $0x208] sm:$0xff]
    %v1941 = vld [vmem:[#allocation8 + $0x210] sm:$0xff]
    %v1942 = vld [vmem:[#allocation8 + $0x218] sm:$0xff]
    %v1943 = vld [vmem:[#allocation8 + $0x220] sm:$0xff]
    %v1944 = vld [vmem:[#allocation8 + $0x228] sm:$0xff]
    %v1945 = vld [vmem:[#allocation8 + $0x230] sm:$0xff]
    %v1946 = vld [vmem:[#allocation8 + $0x238] sm:$0xff]
    %v1947 = vld [vmem:[#allocation8 + $0x240] sm:$0xff]
    %v1948 = vld [vmem:[#allocation8 + $0x248] sm:$0xff]
    %v1949 = vld [vmem:[#allocation8 + $0x250] sm:$0xff]
    %v1950 = vld [vmem:[#allocation8 + $0x258] sm:$0xff]
    %v1951 = vld [vmem:[#allocation8 + $0x260] sm:$0xff]
    %v1952 = vld [vmem:[#allocation8 + $0x268] sm:$0xff]
    %v1953 = vld [vmem:[#allocation8 + $0x270] sm:$0xff]
    %v1954 = vld [vmem:[#allocation8 + $0x278] sm:$0xff]
    %v1955 = vld [vmem:[#allocation8 + $0x280] sm:$0xff]
    %v1956 = vld [vmem:[#allocation8 + $0x288] sm:$0xff]
    %v1957 = vld [vmem:[#allocation8 + $0x290] sm:$0xff]
    %v1958 = vld [vmem:[#allocation8 + $0x298] sm:$0xff]
    %v1959 = vld [vmem:[#allocation8 + $0x2a0] sm:$0xff]
    %v1960 = vld [vmem:[#allocation8 + $0x2a8] sm:$0xff]
    %v1961 = vld [vmem:[#allocation8 + $0x2b0] sm:$0xff]
    %v1962 = vld [vmem:[#allocation8 + $0x2b8] sm:$0xff]
    %v1963 = vld [vmem:[#allocation8 + $0x2c0] sm:$0xff]
    %v1964 = vld [vmem:[#allocation8 + $0x2c8] sm:$0xff]
    %v1965 = vld [vmem:[#allocation8 + $0x2d0] sm:$0xff]
    %v1966 = vld [vmem:[#allocation8 + $0x2d8] sm:$0xff]
    %v1967 = vld [vmem:[#allocation8 + $0x2e0] sm:$0xff]
    %v1968 = vld [vmem:[#allocation8 + $0x2e8] sm:$0xff]
    %v1969 = vld [vmem:[#allocation8 + $0x2f0] sm:$0xff]
    %v1970 = vld [vmem:[#allocation8 + $0x2f8] sm:$0xff]
    %v1971 = vld [vmem:[#allocation8 + $0x300] sm:$0xff]
    %v1972 = vld [vmem:[#allocation8 + $0x308] sm:$0xff]
    %v1973 = vld [vmem:[#allocation8 + $0x310] sm:$0xff]
    %v1974 = vld [vmem:[#allocation8 + $0x318] sm:$0xff]
    %v1975 = vld [vmem:[#allocation8 + $0x320] sm:$0xff]
    %v1976 = vld [vmem:[#allocation8 + $0x328] sm:$0xff]
    %v1977 = vld [vmem:[#allocation8 + $0x330] sm:$0xff]
    %v1978 = vld [vmem:[#allocation8 + $0x338] sm:$0xff]
    %v1979 = vld [vmem:[#allocation8 + $0x340] sm:$0xff]
    %v1980 = vld [vmem:[#allocation8 + $0x348] sm:$0xff]
    %v1981 = vld [vmem:[#allocation8 + $0x350] sm:$0xff]
    %v1982 = vld [vmem:[#allocation8 + $0x358] sm:$0xff]
    %v1983 = vld [vmem:[#allocation8 + $0x360] sm:$0xff]
    %v1984 = vld [vmem:[#allocation8 + $0x368] sm:$0xff]
    %v1985 = vld [vmem:[#allocation8 + $0x370] sm:$0xff]
    %v1986 = vld [vmem:[#allocation8 + $0x378] sm:$0xff]
    %v1987 = vld [vmem:[#allocation8 + $0x380] sm:$0xff]
    %v1988 = vld [vmem:[#allocation8 + $0x388] sm:$0xff]
    %v1989 = vld [vmem:[#allocation8 + $0x390] sm:$0xff]
    %v1990 = vld [vmem:[#allocation8 + $0x398] sm:$0xff]
    %v1991 = vld [vmem:[#allocation8 + $0x3a0] sm:$0xff]
    %v1992 = vld [vmem:[#allocation8 + $0x3a8] sm:$0xff]
    %v1993 = vld [vmem:[#allocation8 + $0x3b0] sm:$0xff]
    %v1994 = vld [vmem:[#allocation8 + $0x3b8] sm:$0xff]
    %v1995 = vld [vmem:[#allocation8 + $0x3c0] sm:$0xff]
    %v1996 = vld [vmem:[#allocation8 + $0x3c8] sm:$0xff]
    %v1997 = vld [vmem:[#allocation8 + $0x3d0] sm:$0xff]
    %v1998 = vld [vmem:[#allocation8 + $0x3d8] sm:$0xff]
    %v1999 = vld [vmem:[#allocation8 + $0x3e0] sm:$0xff]
    %v2000 = vld [vmem:[#allocation8 + $0x3e8] sm:$0xff]
    %v2001 = vld [vmem:[#allocation8 + $0x3f0] sm:$0xff]
    %v2002 = vld [vmem:[#allocation8 + $0x3f8] sm:$0xff]
    %v2003 = vld [vmem:[#allocation10] sm:$0xf]
    %v2005 = vperm.slane %v2003, 0
    %v2006 = vperm.slane %v2003, 1
    %v2007 = vperm.slane %v2003, 2
    %v2008 = vperm.slane %v2003, 3
    %v2141 = vunpack.c.l.b16 %v1875
    %v2142 = vunpack.c.h.b16 %v1875
    %v2143 = vunpack.c.l.b16 %v1876
    %v2144 = vunpack.c.h.b16 %v1876
    %v2145 = vunpack.c.l.b16 %v1877
    %v2146 = vunpack.c.h.b16 %v1877
    %v2147 = vunpack.c.l.b16 %v1878
    %v2148 = vunpack.c.h.b16 %v1878
    %v2149 = vunpack.c.l.b16 %v1879
    %v2150 = vunpack.c.h.b16 %v1879
    %v2151 = vunpack.c.l.b16 %v1880
    %v2152 = vunpack.c.h.b16 %v1880
    %v2153 = vunpack.c.l.b16 %v1881
    %v2154 = vunpack.c.h.b16 %v1881
    %v2155 = vunpack.c.l.b16 %v1882
    %v2156 = vunpack.c.h.b16 %v1882
    %v2157 = vunpack.c.l.b16 %v1883
    %v2158 = vunpack.c.h.b16 %v1883
    %v2159 = vunpack.c.l.b16 %v1884
    %v2160 = vunpack.c.h.b16 %v1884
    %v2161 = vunpack.c.l.b16 %v1885
    %v2162 = vunpack.c.h.b16 %v1885
    %v2163 = vunpack.c.l.b16 %v1886
    %v2164 = vunpack.c.h.b16 %v1886
    %v2165 = vunpack.c.l.b16 %v1887
    %v2166 = vunpack.c.h.b16 %v1887
    %v2167 = vunpack.c.l.b16 %v1888
    %v2168 = vunpack.c.h.b16 %v1888
    %v2169 = vunpack.c.l.b16 %v1889
    %v2170 = vunpack.c.h.b16 %v1889
    %v2171 = vunpack.c.l.b16 %v1890
    %v2172 = vunpack.c.h.b16 %v1890
    %v2173 = vunpack.c.l.b16 %v1891
    %v2174 = vunpack.c.h.b16 %v1891
    %v2175 = vunpack.c.l.b16 %v1892
    %v2176 = vunpack.c.h.b16 %v1892
    %v2177 = vunpack.c.l.b16 %v1893
    %v2178 = vunpack.c.h.b16 %v1893
    %v2179 = vunpack.c.l.b16 %v1894
    %v2180 = vunpack.c.h.b16 %v1894
    %v2181 = vunpack.c.l.b16 %v1895
    %v2182 = vunpack.c.h.b16 %v1895
    %v2183 = vunpack.c.l.b16 %v1896
    %v2184 = vunpack.c.h.b16 %v1896
    %v2185 = vunpack.c.l.b16 %v1897
    %v2186 = vunpack.c.h.b16 %v1897
    %v2187 = vunpack.c.l.b16 %v1898
    %v2188 = vunpack.c.h.b16 %v1898
    %v2189 = vunpack.c.l.b16 %v1899
    %v2190 = vunpack.c.h.b16 %v1899
    %v2191 = vunpack.c.l.b16 %v1900
    %v2192 = vunpack.c.h.b16 %v1900
    %v2193 = vunpack.c.l.b16 %v1901
    %v2194 = vunpack.c.h.b16 %v1901
    %v2195 = vunpack.c.l.b16 %v1902
    %v2196 = vunpack.c.h.b16 %v1902
    %v2197 = vunpack.c.l.b16 %v1903
    %v2198 = vunpack.c.h.b16 %v1903
    %v2199 = vunpack.c.l.b16 %v1904
    %v2200 = vunpack.c.h.b16 %v1904
    %v2201 = vunpack.c.l.b16 %v1905
    %v2202 = vunpack.c.h.b16 %v1905
    %v2203 = vunpack.c.l.b16 %v1906
    %v2204 = vunpack.c.h.b16 %v1906
    %v2205 = vunpack.c.l.b16 %v1907
    %v2206 = vunpack.c.h.b16 %v1907
    %v2207 = vunpack.c.l.b16 %v1908
    %v2208 = vunpack.c.h.b16 %v1908
    %v2209 = vunpack.c.l.b16 %v1909
    %v2210 = vunpack.c.h.b16 %v1909
    %v2211 = vunpack.c.l.b16 %v1910
    %v2212 = vunpack.c.h.b16 %v1910
    %v2213 = vunpack.c.l.b16 %v1911
    %v2214 = vunpack.c.h.b16 %v1911
    %v2215 = vunpack.c.l.b16 %v1912
    %v2216 = vunpack.c.h.b16 %v1912
    %v2217 = vunpack.c.l.b16 %v1913
    %v2218 = vunpack.c.h.b16 %v1913
    %v2219 = vunpack.c.l.b16 %v1914
    %v2220 = vunpack.c.h.b16 %v1914
    %v2221 = vunpack.c.l.b16 %v1915
    %v2222 = vunpack.c.h.b16 %v1915
    %v2223 = vunpack.c.l.b16 %v1916
    %v2224 = vunpack.c.h.b16 %v1916
    %v2225 = vunpack.c.l.b16 %v1917
    %v2226 = vunpack.c.h.b16 %v1917
    %v2227 = vunpack.c.l.b16 %v1918
    %v2228 = vunpack.c.h.b16 %v1918
    %v2229 = vunpack.c.l.b16 %v1919
    %v2230 = vunpack.c.h.b16 %v1919
    %v2231 = vunpack.c.l.b16 %v1920
    %v2232 = vunpack.c.h.b16 %v1920
    %v2233 = vunpack.c.l.b16 %v1921
    %v2234 = vunpack.c.h.b16 %v1921
    %v2235 = vunpack.c.l.b16 %v1922
    %v2236 = vunpack.c.h.b16 %v1922
    %v2237 = vunpack.c.l.b16 %v1923
    %v2238 = vunpack.c.h.b16 %v1923
    %v2239 = vunpack.c.l.b16 %v1924
    %v2240 = vunpack.c.h.b16 %v1924
    %v2241 = vunpack.c.l.b16 %v1925
    %v2242 = vunpack.c.h.b16 %v1925
    %v2243 = vunpack.c.l.b16 %v1926
    %v2244 = vunpack.c.h.b16 %v1926
    %v2245 = vunpack.c.l.b16 %v1927
    %v2246 = vunpack.c.h.b16 %v1927
    %v2247 = vunpack.c.l.b16 %v1928
    %v2248 = vunpack.c.h.b16 %v1928
    %v2249 = vunpack.c.l.b16 %v1929
    %v2250 = vunpack.c.h.b16 %v1929
    %v2251 = vunpack.c.l.b16 %v1930
    %v2252 = vunpack.c.h.b16 %v1930
    %v2253 = vunpack.c.l.b16 %v1931
    %v2254 = vunpack.c.h.b16 %v1931
    %v2255 = vunpack.c.l.b16 %v1932
    %v2256 = vunpack.c.h.b16 %v1932
    %v2257 = vunpack.c.l.b16 %v1933
    %v2258 = vunpack.c.h.b16 %v1933
    %v2259 = vunpack.c.l.b16 %v1934
    %v2260 = vunpack.c.h.b16 %v1934
    %v2261 = vunpack.c.l.b16 %v1935
    %v2262 = vunpack.c.h.b16 %v1935
    %v2263 = vunpack.c.l.b16 %v1936
    %v2264 = vunpack.c.h.b16 %v1936
    %v2265 = vunpack.c.l.b16 %v1937
    %v2266 = vunpack.c.h.b16 %v1937
    %v2267 = vunpack.c.l.b16 %v1938
    %v2268 = vunpack.c.h.b16 %v1938
    %v2269 = vunpack.c.l.b16 %v1939
    %v2270 = vunpack.c.h.b16 %v1939
    %v2271 = vunpack.c.l.b16 %v1940
    %v2272 = vunpack.c.h.b16 %v1940
    %v2273 = vunpack.c.l.b16 %v1941
    %v2274 = vunpack.c.h.b16 %v1941
    %v2275 = vunpack.c.l.b16 %v1942
    %v2276 = vunpack.c.h.b16 %v1942
    %v2277 = vunpack.c.l.b16 %v1943
    %v2278 = vunpack.c.h.b16 %v1943
    %v2279 = vunpack.c.l.b16 %v1944
    %v2280 = vunpack.c.h.b16 %v1944
    %v2281 = vunpack.c.l.b16 %v1945
    %v2282 = vunpack.c.h.b16 %v1945
    %v2283 = vunpack.c.l.b16 %v1946
    %v2284 = vunpack.c.h.b16 %v1946
    %v2285 = vunpack.c.l.b16 %v1947
    %v2286 = vunpack.c.h.b16 %v1947
    %v2287 = vunpack.c.l.b16 %v1948
    %v2288 = vunpack.c.h.b16 %v1948
    %v2289 = vunpack.c.l.b16 %v1949
    %v2290 = vunpack.c.h.b16 %v1949
    %v2291 = vunpack.c.l.b16 %v1950
    %v2292 = vunpack.c.h.b16 %v1950
    %v2293 = vunpack.c.l.b16 %v1951
    %v2294 = vunpack.c.h.b16 %v1951
    %v2295 = vunpack.c.l.b16 %v1952
    %v2296 = vunpack.c.h.b16 %v1952
    %v2297 = vunpack.c.l.b16 %v1953
    %v2298 = vunpack.c.h.b16 %v1953
    %v2299 = vunpack.c.l.b16 %v1954
    %v2300 = vunpack.c.h.b16 %v1954
    %v2301 = vunpack.c.l.b16 %v1955
    %v2302 = vunpack.c.h.b16 %v1955
    %v2303 = vunpack.c.l.b16 %v1956
    %v2304 = vunpack.c.h.b16 %v1956
    %v2305 = vunpack.c.l.b16 %v1957
    %v2306 = vunpack.c.h.b16 %v1957
    %v2307 = vunpack.c.l.b16 %v1958
    %v2308 = vunpack.c.h.b16 %v1958
    %v2309 = vunpack.c.l.b16 %v1959
    %v2310 = vunpack.c.h.b16 %v1959
    %v2311 = vunpack.c.l.b16 %v1960
    %v2312 = vunpack.c.h.b16 %v1960
    %v2313 = vunpack.c.l.b16 %v1961
    %v2314 = vunpack.c.h.b16 %v1961
    %v2315 = vunpack.c.l.b16 %v1962
    %v2316 = vunpack.c.h.b16 %v1962
    %v2317 = vunpack.c.l.b16 %v1963
    %v2318 = vunpack.c.h.b16 %v1963
    %v2319 = vunpack.c.l.b16 %v1964
    %v2320 = vunpack.c.h.b16 %v1964
    %v2321 = vunpack.c.l.b16 %v1965
    %v2322 = vunpack.c.h.b16 %v1965
    %v2323 = vunpack.c.l.b16 %v1966
    %v2324 = vunpack.c.h.b16 %v1966
    %v2325 = vunpack.c.l.b16 %v1967
    %v2326 = vunpack.c.h.b16 %v1967
    %v2327 = vunpack.c.l.b16 %v1968
    %v2328 = vunpack.c.h.b16 %v1968
    %v2329 = vunpack.c.l.b16 %v1969
    %v2330 = vunpack.c.h.b16 %v1969
    %v2331 = vunpack.c.l.b16 %v1970
    %v2332 = vunpack.c.h.b16 %v1970
    %v2333 = vunpack.c.l.b16 %v1971
    %v2334 = vunpack.c.h.b16 %v1971
    %v2335 = vunpack.c.l.b16 %v1972
    %v2336 = vunpack.c.h.b16 %v1972
    %v2337 = vunpack.c.l.b16 %v1973
    %v2338 = vunpack.c.h.b16 %v1973
    %v2339 = vunpack.c.l.b16 %v1974
    %v2340 = vunpack.c.h.b16 %v1974
    %v2341 = vunpack.c.l.b16 %v1975
    %v2342 = vunpack.c.h.b16 %v1975
    %v2343 = vunpack.c.l.b16 %v1976
    %v2344 = vunpack.c.h.b16 %v1976
    %v2345 = vunpack.c.l.b16 %v1977
    %v2346 = vunpack.c.h.b16 %v1977
    %v2347 = vunpack.c.l.b16 %v1978
    %v2348 = vunpack.c.h.b16 %v1978
    %v2349 = vunpack.c.l.b16 %v1979
    %v2350 = vunpack.c.h.b16 %v1979
    %v2351 = vunpack.c.l.b16 %v1980
    %v2352 = vunpack.c.h.b16 %v1980
    %v2353 = vunpack.c.l.b16 %v1981
    %v2354 = vunpack.c.h.b16 %v1981
    %v2355 = vunpack.c.l.b16 %v1982
    %v2356 = vunpack.c.h.b16 %v1982
    %v2357 = vunpack.c.l.b16 %v1983
    %v2358 = vunpack.c.h.b16 %v1983
    %v2359 = vunpack.c.l.b16 %v1984
    %v2360 = vunpack.c.h.b16 %v1984
    %v2361 = vunpack.c.l.b16 %v1985
    %v2362 = vunpack.c.h.b16 %v1985
    %v2363 = vunpack.c.l.b16 %v1986
    %v2364 = vunpack.c.h.b16 %v1986
    %v2365 = vunpack.c.l.b16 %v1987
    %v2366 = vunpack.c.h.b16 %v1987
    %v2367 = vunpack.c.l.b16 %v1988
    %v2368 = vunpack.c.h.b16 %v1988
    %v2369 = vunpack.c.l.b16 %v1989
    %v2370 = vunpack.c.h.b16 %v1989
    %v2371 = vunpack.c.l.b16 %v1990
    %v2372 = vunpack.c.h.b16 %v1990
    %v2373 = vunpack.c.l.b16 %v1991
    %v2374 = vunpack.c.h.b16 %v1991
    %v2375 = vunpack.c.l.b16 %v1992
    %v2376 = vunpack.c.h.b16 %v1992
    %v2377 = vunpack.c.l.b16 %v1993
    %v2378 = vunpack.c.h.b16 %v1993
    %v2379 = vunpack.c.l.b16 %v1994
    %v2380 = vunpack.c.h.b16 %v1994
    %v2381 = vunpack.c.l.b16 %v1995
    %v2382 = vunpack.c.h.b16 %v1995
    %v2383 = vunpack.c.l.b16 %v1996
    %v2384 = vunpack.c.h.b16 %v1996
    %v2385 = vunpack.c.l.b16 %v1997
    %v2386 = vunpack.c.h.b16 %v1997
    %v2387 = vunpack.c.l.b16 %v1998
    %v2388 = vunpack.c.h.b16 %v1998
    %v2389 = vunpack.c.l.b16 %v1999
    %v2390 = vunpack.c.h.b16 %v1999
    %v2391 = vunpack.c.l.b16 %v2000
    %v2392 = vunpack.c.h.b16 %v2000
    %v2393 = vunpack.c.l.b16 %v2001
    %v2394 = vunpack.c.h.b16 %v2001
    %v2395 = vunpack.c.l.b16 %v2002
    %v2396 = vunpack.c.h.b16 %v2002
    %v2397 = vpack.c.b16 %v2145, %v2141
    %v2398 = vpack.c.b16 %v2146, %v2142
    %v2399 = vpack.c.b16 %v2147, %v2143
    %v2400 = vpack.c.b16 %v2148, %v2144
    %v2401 = vpack.c.b16 %v2153, %v2149
    %v2402 = vpack.c.b16 %v2154, %v2150
    %v2403 = vpack.c.b16 %v2155, %v2151
    %v2404 = vpack.c.b16 %v2156, %v2152
    %v2405 = vpack.c.b16 %v2161, %v2157
    %v2406 = vpack.c.b16 %v2162, %v2158
    %v2407 = vpack.c.b16 %v2163, %v2159
    %v2408 = vpack.c.b16 %v2164, %v2160
    %v2409 = vpack.c.b16 %v2169, %v2165
    %v2410 = vpack.c.b16 %v2170, %v2166
    %v2411 = vpack.c.b16 %v2171, %v2167
    %v2412 = vpack.c.b16 %v2172, %v2168
    %v2413 = vpack.c.b16 %v2177, %v2173
    %v2414 = vpack.c.b16 %v2178, %v2174
    %v2415 = vpack.c.b16 %v2179, %v2175
    %v2416 = vpack.c.b16 %v2180, %v2176
    %v2417 = vpack.c.b16 %v2185, %v2181
    %v2418 = vpack.c.b16 %v2186, %v2182
    %v2419 = vpack.c.b16 %v2187, %v2183
    %v2420 = vpack.c.b16 %v2188, %v2184
    %v2421 = vpack.c.b16 %v2193, %v2189
    %v2422 = vpack.c.b16 %v2194, %v2190
    %v2423 = vpack.c.b16 %v2195, %v2191
    %v2424 = vpack.c.b16 %v2196, %v2192
    %v2425 = vpack.c.b16 %v2201, %v2197
    %v2426 = vpack.c.b16 %v2202, %v2198
    %v2427 = vpack.c.b16 %v2203, %v2199
    %v2428 = vpack.c.b16 %v2204, %v2200
    %v2429 = vpack.c.b16 %v2209, %v2205
    %v2430 = vpack.c.b16 %v2210, %v2206
    %v2431 = vpack.c.b16 %v2211, %v2207
    %v2432 = vpack.c.b16 %v2212, %v2208
    %v2433 = vpack.c.b16 %v2217, %v2213
    %v2434 = vpack.c.b16 %v2218, %v2214
    %v2435 = vpack.c.b16 %v2219, %v2215
    %v2436 = vpack.c.b16 %v2220, %v2216
    %v2437 = vpack.c.b16 %v2225, %v2221
    %v2438 = vpack.c.b16 %v2226, %v2222
    %v2439 = vpack.c.b16 %v2227, %v2223
    %v2440 = vpack.c.b16 %v2228, %v2224
    %v2441 = vpack.c.b16 %v2233, %v2229
    %v2442 = vpack.c.b16 %v2234, %v2230
    %v2443 = vpack.c.b16 %v2235, %v2231
    %v2444 = vpack.c.b16 %v2236, %v2232
    %v2445 = vpack.c.b16 %v2241, %v2237
    %v2446 = vpack.c.b16 %v2242, %v2238
    %v2447 = vpack.c.b16 %v2243, %v2239
    %v2448 = vpack.c.b16 %v2244, %v2240
    %v2449 = vpack.c.b16 %v2249, %v2245
    %v2450 = vpack.c.b16 %v2250, %v2246
    %v2451 = vpack.c.b16 %v2251, %v2247
    %v2452 = vpack.c.b16 %v2252, %v2248
    %v2453 = vpack.c.b16 %v2257, %v2253
    %v2454 = vpack.c.b16 %v2258, %v2254
    %v2455 = vpack.c.b16 %v2259, %v2255
    %v2456 = vpack.c.b16 %v2260, %v2256
    %v2457 = vpack.c.b16 %v2265, %v2261
    %v2458 = vpack.c.b16 %v2266, %v2262
    %v2459 = vpack.c.b16 %v2267, %v2263
    %v2460 = vpack.c.b16 %v2268, %v2264
    %v2461 = vpack.c.b16 %v2273, %v2269
    %v2462 = vpack.c.b16 %v2274, %v2270
    %v2463 = vpack.c.b16 %v2275, %v2271
    %v2464 = vpack.c.b16 %v2276, %v2272
    %v2465 = vpack.c.b16 %v2281, %v2277
    %v2466 = vpack.c.b16 %v2282, %v2278
    %v2467 = vpack.c.b16 %v2283, %v2279
    %v2468 = vpack.c.b16 %v2284, %v2280
    %v2469 = vpack.c.b16 %v2289, %v2285
    %v2470 = vpack.c.b16 %v2290, %v2286
    %v2471 = vpack.c.b16 %v2291, %v2287
    %v2472 = vpack.c.b16 %v2292, %v2288
    %v2473 = vpack.c.b16 %v2297, %v2293
    %v2474 = vpack.c.b16 %v2298, %v2294
    %v2475 = vpack.c.b16 %v2299, %v2295
    %v2476 = vpack.c.b16 %v2300, %v2296
    %v2477 = vpack.c.b16 %v2305, %v2301
    %v2478 = vpack.c.b16 %v2306, %v2302
    %v2479 = vpack.c.b16 %v2307, %v2303
    %v2480 = vpack.c.b16 %v2308, %v2304
    %v2481 = vpack.c.b16 %v2313, %v2309
    %v2482 = vpack.c.b16 %v2314, %v2310
    %v2483 = vpack.c.b16 %v2315, %v2311
    %v2484 = vpack.c.b16 %v2316, %v2312
    %v2485 = vpack.c.b16 %v2321, %v2317
    %v2486 = vpack.c.b16 %v2322, %v2318
    %v2487 = vpack.c.b16 %v2323, %v2319
    %v2488 = vpack.c.b16 %v2324, %v2320
    %v2489 = vpack.c.b16 %v2329, %v2325
    %v2490 = vpack.c.b16 %v2330, %v2326
    %v2491 = vpack.c.b16 %v2331, %v2327
    %v2492 = vpack.c.b16 %v2332, %v2328
    %v2493 = vpack.c.b16 %v2337, %v2333
    %v2494 = vpack.c.b16 %v2338, %v2334
    %v2495 = vpack.c.b16 %v2339, %v2335
    %v2496 = vpack.c.b16 %v2340, %v2336
    %v2497 = vpack.c.b16 %v2345, %v2341
    %v2498 = vpack.c.b16 %v2346, %v2342
    %v2499 = vpack.c.b16 %v2347, %v2343
    %v2500 = vpack.c.b16 %v2348, %v2344
    %v2501 = vpack.c.b16 %v2353, %v2349
    %v2502 = vpack.c.b16 %v2354, %v2350
    %v2503 = vpack.c.b16 %v2355, %v2351
    %v2504 = vpack.c.b16 %v2356, %v2352
    %v2505 = vpack.c.b16 %v2361, %v2357
    %v2506 = vpack.c.b16 %v2362, %v2358
    %v2507 = vpack.c.b16 %v2363, %v2359
    %v2508 = vpack.c.b16 %v2364, %v2360
    %v2509 = vpack.c.b16 %v2369, %v2365
    %v2510 = vpack.c.b16 %v2370, %v2366
    %v2511 = vpack.c.b16 %v2371, %v2367
    %v2512 = vpack.c.b16 %v2372, %v2368
    %v2513 = vpack.c.b16 %v2377, %v2373
    %v2514 = vpack.c.b16 %v2378, %v2374
    %v2515 = vpack.c.b16 %v2379, %v2375
    %v2516 = vpack.c.b16 %v2380, %v2376
    %v2517 = vpack.c.b16 %v2385, %v2381
    %v2518 = vpack.c.b16 %v2386, %v2382
    %v2519 = vpack.c.b16 %v2387, %v2383
    %v2520 = vpack.c.b16 %v2388, %v2384
    %v2521 = vpack.c.b16 %v2393, %v2389
    %v2522 = vpack.c.b16 %v2394, %v2390
    %v2523 = vpack.c.b16 %v2395, %v2391
    %v2524 = vpack.c.b16 %v2396, %v2392
    %2653 = vmatpush.bf16.msra.mxu0 %v2425
    %2654 = vmatpush.bf16.msra.mxu0 %v2421
    %2655 = vmatpush.bf16.msra.mxu0 %v2417
    %2656 = vmatpush.bf16.msra.mxu0 %v2413
    %2657 = vmatpush.bf16.msra.mxu0 %v2409
    %2658 = vmatpush.bf16.msra.mxu0 %v2405
    %2659 = vmatpush.bf16.msra.mxu0 %v2401
    %2660 = vmatpush.bf16.msra.mxu0 %v2397
    %2661 = vmatmul.bf16.gmra.mxu0 %v1871
    %v2662 = vpop.f32.mrf.mxu0
    %v2663 = vadd.f32 %v2005, %v2662
    %v2664 = vpop.f32.mrf.mxu0
    %2665 = vdwg.mxu0
    %2666 = vmatpush.bf16.msra.mxu0 %v2457
    %2667 = vmatpush.bf16.msra.mxu0 %v2453
    %2668 = vmatpush.bf16.msra.mxu0 %v2449
    %2669 = vmatpush.bf16.msra.mxu0 %v2445
    %2670 = vmatpush.bf16.msra.mxu0 %v2441
    %2671 = vmatpush.bf16.msra.mxu0 %v2437
    %2672 = vmatpush.bf16.msra.mxu0 %v2433
    %2673 = vmatpush.bf16.msra.mxu0 %v2429
    %2674 = vmatmul.bf16.gmra.mxu0 %v1872
    %v2675 = vpop.f32.mrf.mxu0
    %v2676 = vadd.f32 %v2663, %v2675
    %v2677 = vpop.f32.mrf.mxu0
    %2678 = vdwg.mxu0
    %2679 = vmatpush.bf16.msra.mxu0 %v2489
    %2680 = vmatpush.bf16.msra.mxu0 %v2485
    %2681 = vmatpush.bf16.msra.mxu0 %v2481
    %2682 = vmatpush.bf16.msra.mxu0 %v2477
    %2683 = vmatpush.bf16.msra.mxu0 %v2473
    %2684 = vmatpush.bf16.msra.mxu0 %v2469
    %2685 = vmatpush.bf16.msra.mxu0 %v2465
    %2686 = vmatpush.bf16.msra.mxu0 %v2461
    %2687 = vmatmul.bf16.gmra.mxu0 %v1873
    %v2688 = vpop.f32.mrf.mxu0
    %v2689 = vadd.f32 %v2676, %v2688
    %v2690 = vpop.f32.mrf.mxu0
    %2691 = vdwg.mxu0
    %2692 = vmatpush.bf16.msra.mxu0 %v2521
    %2693 = vmatpush.bf16.msra.mxu0 %v2517
    %2694 = vmatpush.bf16.msra.mxu0 %v2513
    %2695 = vmatpush.bf16.msra.mxu0 %v2509
    %2696 = vmatpush.bf16.msra.mxu0 %v2505
    %2697 = vmatpush.bf16.msra.mxu0 %v2501
    %2698 = vmatpush.bf16.msra.mxu0 %v2497
    %2699 = vmatpush.bf16.msra.mxu0 %v2493
    %2700 = vmatmul.bf16.gmra.mxu0 %v1874
    %v2701 = vpop.f32.mrf.mxu0
    %v2702 = vadd.f32 %v2689, %v2701
    %v2703 = vpop.f32.mrf.mxu0
    %2704 = vdwg.mxu0
    %2705 = vmatpush.bf16.msra.mxu0 %v2426
    %2706 = vmatpush.bf16.msra.mxu0 %v2422
    %2707 = vmatpush.bf16.msra.mxu0 %v2418
    %2708 = vmatpush.bf16.msra.mxu0 %v2414
    %2709 = vmatpush.bf16.msra.mxu0 %v2410
    %2710 = vmatpush.bf16.msra.mxu0 %v2406
    %2711 = vmatpush.bf16.msra.mxu0 %v2402
    %2712 = vmatpush.bf16.msra.mxu0 %v2398
    %2713 = vmatmul.bf16.gmra.mxu0 %v1871
    %v2714 = vpop.f32.mrf.mxu0
    %v2715 = vadd.f32 %v2006, %v2714
    %v2716 = vpop.f32.mrf.mxu0
    %2717 = vdwg.mxu0
    %2718 = vmatpush.bf16.msra.mxu0 %v2458
    %2719 = vmatpush.bf16.msra.mxu0 %v2454
    %2720 = vmatpush.bf16.msra.mxu0 %v2450
    %2721 = vmatpush.bf16.msra.mxu0 %v2446
    %2722 = vmatpush.bf16.msra.mxu0 %v2442
    %2723 = vmatpush.bf16.msra.mxu0 %v2438
    %2724 = vmatpush.bf16.msra.mxu0 %v2434
    %2725 = vmatpush.bf16.msra.mxu0 %v2430
    %2726 = vmatmul.bf16.gmra.mxu0 %v1872
    %v2727 = vpop.f32.mrf.mxu0
    %v2728 = vadd.f32 %v2715, %v2727
    %v2729 = vpop.f32.mrf.mxu0
    %2730 = vdwg.mxu0
    %2731 = vmatpush.bf16.msra.mxu0 %v2490
    %2732 = vmatpush.bf16.msra.mxu0 %v2486
    %2733 = vmatpush.bf16.msra.mxu0 %v2482
    %2734 = vmatpush.bf16.msra.mxu0 %v2478
    %2735 = vmatpush.bf16.msra.mxu0 %v2474
    %2736 = vmatpush.bf16.msra.mxu0 %v2470
    %2737 = vmatpush.bf16.msra.mxu0 %v2466
    %2738 = vmatpush.bf16.msra.mxu0 %v2462
    %2739 = vmatmul.bf16.gmra.mxu0 %v1873
    %v2740 = vpop.f32.mrf.mxu0
    %v2741 = vadd.f32 %v2728, %v2740
    %v2742 = vpop.f32.mrf.mxu0
    %2743 = vdwg.mxu0
    %2744 = vmatpush.bf16.msra.mxu0 %v2522
    %2745 = vmatpush.bf16.msra.mxu0 %v2518
    %2746 = vmatpush.bf16.msra.mxu0 %v2514
    %2747 = vmatpush.bf16.msra.mxu0 %v2510
    %2748 = vmatpush.bf16.msra.mxu0 %v2506
    %2749 = vmatpush.bf16.msra.mxu0 %v2502
    %2750 = vmatpush.bf16.msra.mxu0 %v2498
    %2751 = vmatpush.bf16.msra.mxu0 %v2494
    %2752 = vmatmul.bf16.gmra.mxu0 %v1874
    %v2753 = vpop.f32.mrf.mxu0
    %v2754 = vadd.f32 %v2741, %v2753
    %v2755 = vpop.f32.mrf.mxu0
    %2756 = vdwg.mxu0
    %2757 = vmatpush.bf16.msra.mxu0 %v2427
    %2758 = vmatpush.bf16.msra.mxu0 %v2423
    %2759 = vmatpush.bf16.msra.mxu0 %v2419
    %2760 = vmatpush.bf16.msra.mxu0 %v2415
    %2761 = vmatpush.bf16.msra.mxu0 %v2411
    %2762 = vmatpush.bf16.msra.mxu0 %v2407
    %2763 = vmatpush.bf16.msra.mxu0 %v2403
    %2764 = vmatpush.bf16.msra.mxu0 %v2399
    %2765 = vmatmul.bf16.gmra.mxu0 %v1871
    %v2766 = vpop.f32.mrf.mxu0
    %v2767 = vadd.f32 %v2007, %v2766
    %v2768 = vpop.f32.mrf.mxu0
    %2769 = vdwg.mxu0
    %2770 = vmatpush.bf16.msra.mxu0 %v2459
    %2771 = vmatpush.bf16.msra.mxu0 %v2455
    %2772 = vmatpush.bf16.msra.mxu0 %v2451
    %2773 = vmatpush.bf16.msra.mxu0 %v2447
    %2774 = vmatpush.bf16.msra.mxu0 %v2443
    %2775 = vmatpush.bf16.msra.mxu0 %v2439
    %2776 = vmatpush.bf16.msra.mxu0 %v2435
    %2777 = vmatpush.bf16.msra.mxu0 %v2431
    %2778 = vmatmul.bf16.gmra.mxu0 %v1872
    %v2779 = vpop.f32.mrf.mxu0
    %v2780 = vadd.f32 %v2767, %v2779
    %v2781 = vpop.f32.mrf.mxu0
    %2782 = vdwg.mxu0
    %2783 = vmatpush.bf16.msra.mxu0 %v2491
    %2784 = vmatpush.bf16.msra.mxu0 %v2487
    %2785 = vmatpush.bf16.msra.mxu0 %v2483
    %2786 = vmatpush.bf16.msra.mxu0 %v2479
    %2787 = vmatpush.bf16.msra.mxu0 %v2475
    %2788 = vmatpush.bf16.msra.mxu0 %v2471
    %2789 = vmatpush.bf16.msra.mxu0 %v2467
    %2790 = vmatpush.bf16.msra.mxu0 %v2463
    %2791 = vmatmul.bf16.gmra.mxu0 %v1873
    %v2792 = vpop.f32.mrf.mxu0
    %v2793 = vadd.f32 %v2780, %v2792
    %v2794 = vpop.f32.mrf.mxu0
    %2795 = vdwg.mxu0
    %2796 = vmatpush.bf16.msra.mxu0 %v2523
    %2797 = vmatpush.bf16.msra.mxu0 %v2519
    %2798 = vmatpush.bf16.msra.mxu0 %v2515
    %2799 = vmatpush.bf16.msra.mxu0 %v2511
    %2800 = vmatpush.bf16.msra.mxu0 %v2507
    %2801 = vmatpush.bf16.msra.mxu0 %v2503
    %2802 = vmatpush.bf16.msra.mxu0 %v2499
    %2803 = vmatpush.bf16.msra.mxu0 %v2495
    %2804 = vmatmul.bf16.gmra.mxu0 %v1874
    %v2805 = vpop.f32.mrf.mxu0
    %v2806 = vadd.f32 %v2793, %v2805
    %v2807 = vpop.f32.mrf.mxu0
    %2808 = vdwg.mxu0
    %2809 = vmatpush.bf16.msra.mxu0 %v2428
    %2810 = vmatpush.bf16.msra.mxu0 %v2424
    %2811 = vmatpush.bf16.msra.mxu0 %v2420
    %2812 = vmatpush.bf16.msra.mxu0 %v2416
    %2813 = vmatpush.bf16.msra.mxu0 %v2412
    %2814 = vmatpush.bf16.msra.mxu0 %v2408
    %2815 = vmatpush.bf16.msra.mxu0 %v2404
    %2816 = vmatpush.bf16.msra.mxu0 %v2400
    %2817 = vmatmul.bf16.gmra.mxu0 %v1871
    %v2818 = vpop.f32.mrf.mxu0
    %v2819 = vadd.f32 %v2008, %v2818
    %v2820 = vpop.f32.mrf.mxu0
    %2821 = vdwg.mxu0
    %2822 = vmatpush.bf16.msra.mxu0 %v2460
    %2823 = vmatpush.bf16.msra.mxu0 %v2456
    %2824 = vmatpush.bf16.msra.mxu0 %v2452
    %2825 = vmatpush.bf16.msra.mxu0 %v2448
    %2826 = vmatpush.bf16.msra.mxu0 %v2444
    %2827 = vmatpush.bf16.msra.mxu0 %v2440
    %2828 = vmatpush.bf16.msra.mxu0 %v2436
    %2829 = vmatpush.bf16.msra.mxu0 %v2432
    %2830 = vmatmul.bf16.gmra.mxu0 %v1872
    %v2831 = vpop.f32.mrf.mxu0
    %v2832 = vadd.f32 %v2819, %v2831
    %v2833 = vpop.f32.mrf.mxu0
    %2834 = vdwg.mxu0
    %2835 = vmatpush.bf16.msra.mxu0 %v2492
    %2836 = vmatpush.bf16.msra.mxu0 %v2488
    %2837 = vmatpush.bf16.msra.mxu0 %v2484
    %2838 = vmatpush.bf16.msra.mxu0 %v2480
    %2839 = vmatpush.bf16.msra.mxu0 %v2476
    %2840 = vmatpush.bf16.msra.mxu0 %v2472
    %2841 = vmatpush.bf16.msra.mxu0 %v2468
    %2842 = vmatpush.bf16.msra.mxu0 %v2464
    %2843 = vmatmul.bf16.gmra.mxu0 %v1873
    %v2844 = vpop.f32.mrf.mxu0
    %v2845 = vadd.f32 %v2832, %v2844
    %v2846 = vpop.f32.mrf.mxu0
    %2847 = vdwg.mxu0
    %2848 = vmatpush.bf16.msra.mxu0 %v2524
    %2849 = vmatpush.bf16.msra.mxu0 %v2520
    %2850 = vmatpush.bf16.msra.mxu0 %v2516
    %2851 = vmatpush.bf16.msra.mxu0 %v2512
    %2852 = vmatpush.bf16.msra.mxu0 %v2508
    %2853 = vmatpush.bf16.msra.mxu0 %v2504
    %2854 = vmatpush.bf16.msra.mxu0 %v2500
    %2855 = vmatpush.bf16.msra.mxu0 %v2496
    %2856 = vmatmul.bf16.gmra.mxu0 %v1874
    %v2857 = vpop.f32.mrf.mxu0
    %v2858 = vadd.f32 %v2845, %v2857
    %v2859 = vpop.f32.mrf.mxu0
    %2860 = vdwg.mxu0
    %v2861 = vsub.f32 0.0, %v2702
    %v2862 = vsub.f32 0.0, %v2754
    %v2863 = vsub.f32 0.0, %v2806
    %v2864 = vsub.f32 0.0, %v2858
    %v2865 = vmul.f32 %v2861, 1.442695
    %v2866 = vpow.pop %v2865
    %v2867 = vmul.f32 %v2862, 1.442695
    %v2868 = vpow.pop %v2867
    %v2869 = vmul.f32 %v2863, 1.442695
    %v2870 = vpow.pop %v2869
    %v2871 = vmul.f32 %v2864, 1.442695
    %v2872 = vpow.pop %v2871
    %v2873 = vadd.f32 %v2866, 1.0
    %v2874 = vadd.f32 %v2868, 1.0
    %v2875 = vadd.f32 %v2870, 1.0
    %v2876 = vadd.f32 %v2872, 1.0
    %v2877 = vrcp.pop %v2873
    %v2878 = vrcp.pop %v2874
    %v2879 = vrcp.pop %v2875
    %v2880 = vrcp.pop %v2876
    %v2881 = vmul.f32 %v2702, %v2877
    %v2882 = vmul.f32 %v2754, %v2878
    %v2883 = vmul.f32 %v2806, %v2879
    %v2884 = vmul.f32 %v2858, %v2880
    %v2885 = vpack.c.bf16 %v2881, %v2881
    %v2886 = vpack.c.bf16 %v2882, %v2882
    %v2887 = vpack.c.bf16 %v2883, %v2883
    %v2888 = vpack.c.bf16 %v2884, %v2884
    %v2889 = vld [vmem:[#allocation11] sm:$0xf]
    %v2890 = vld [vmem:[#allocation11 + $0x4] sm:$0xf]
    %v2891 = vld [vmem:[#allocation11 + $0x8] sm:$0xf]
    %v2892 = vld [vmem:[#allocation11 + $0xc] sm:$0xf]
    %v2893 = vld [vmem:[#allocation11 + $0x10] sm:$0xf]
    %v2894 = vld [vmem:[#allocation11 + $0x14] sm:$0xf]
    %v2895 = vld [vmem:[#allocation11 + $0x18] sm:$0xf]
    %v2896 = vld [vmem:[#allocation11 + $0x1c] sm:$0xf]
    %v2897 = vld [vmem:[#allocation11 + $0x20] sm:$0xf]
    %v2898 = vld [vmem:[#allocation11 + $0x24] sm:$0xf]
    %v2899 = vld [vmem:[#allocation11 + $0x28] sm:$0xf]
    %v2900 = vld [vmem:[#allocation11 + $0x2c] sm:$0xf]
    %v2901 = vld [vmem:[#allocation11 + $0x30] sm:$0xf]
    %v2902 = vld [vmem:[#allocation11 + $0x34] sm:$0xf]
    %v2903 = vld [vmem:[#allocation11 + $0x38] sm:$0xf]
    %v2904 = vld [vmem:[#allocation11 + $0x3c] sm:$0xf]
    %v2905 = vld [vmem:[#allocation11 + $0x40] sm:$0xf]
    %v2906 = vld [vmem:[#allocation11 + $0x44] sm:$0xf]
    %v2907 = vld [vmem:[#allocation11 + $0x48] sm:$0xf]
    %v2908 = vld [vmem:[#allocation11 + $0x4c] sm:$0xf]
    %v2909 = vld [vmem:[#allocation11 + $0x50] sm:$0xf]
    %v2910 = vld [vmem:[#allocation11 + $0x54] sm:$0xf]
    %v2911 = vld [vmem:[#allocation11 + $0x58] sm:$0xf]
    %v2912 = vld [vmem:[#allocation11 + $0x5c] sm:$0xf]
    %v2913 = vld [vmem:[#allocation11 + $0x60] sm:$0xf]
    %v2914 = vld [vmem:[#allocation11 + $0x64] sm:$0xf]
    %v2915 = vld [vmem:[#allocation11 + $0x68] sm:$0xf]
    %v2916 = vld [vmem:[#allocation11 + $0x6c] sm:$0xf]
    %v2917 = vld [vmem:[#allocation11 + $0x70] sm:$0xf]
    %v2918 = vld [vmem:[#allocation11 + $0x74] sm:$0xf]
    %v2919 = vld [vmem:[#allocation11 + $0x78] sm:$0xf]
    %v2920 = vld [vmem:[#allocation11 + $0x7c] sm:$0xf]
    %v2921 = vld [vmem:[#allocation11 + $0x80] sm:$0xf]
    %v2922 = vld [vmem:[#allocation11 + $0x84] sm:$0xf]
    %v2923 = vld [vmem:[#allocation11 + $0x88] sm:$0xf]
    %v2924 = vld [vmem:[#allocation11 + $0x8c] sm:$0xf]
    %v2925 = vld [vmem:[#allocation11 + $0x90] sm:$0xf]
    %v2926 = vld [vmem:[#allocation11 + $0x94] sm:$0xf]
    %v2927 = vld [vmem:[#allocation11 + $0x98] sm:$0xf]
    %v2928 = vld [vmem:[#allocation11 + $0x9c] sm:$0xf]
    %v2929 = vld [vmem:[#allocation11 + $0xa0] sm:$0xf]
    %v2930 = vld [vmem:[#allocation11 + $0xa4] sm:$0xf]
    %v2931 = vld [vmem:[#allocation11 + $0xa8] sm:$0xf]
    %v2932 = vld [vmem:[#allocation11 + $0xac] sm:$0xf]
    %v2933 = vld [vmem:[#allocation11 + $0xb0] sm:$0xf]
    %v2934 = vld [vmem:[#allocation11 + $0xb4] sm:$0xf]
    %v2935 = vld [vmem:[#allocation11 + $0xb8] sm:$0xf]
    %v2936 = vld [vmem:[#allocation11 + $0xbc] sm:$0xf]
    %v2937 = vld [vmem:[#allocation11 + $0xc0] sm:$0xf]
    %v2938 = vld [vmem:[#allocation11 + $0xc4] sm:$0xf]
    %v2939 = vld [vmem:[#allocation11 + $0xc8] sm:$0xf]
    %v2940 = vld [vmem:[#allocation11 + $0xcc] sm:$0xf]
    %v2941 = vld [vmem:[#allocation11 + $0xd0] sm:$0xf]
    %v2942 = vld [vmem:[#allocation11 + $0xd4] sm:$0xf]
    %v2943 = vld [vmem:[#allocation11 + $0xd8] sm:$0xf]
    %v2944 = vld [vmem:[#allocation11 + $0xdc] sm:$0xf]
    %v2945 = vld [vmem:[#allocation11 + $0xe0] sm:$0xf]
    %v2946 = vld [vmem:[#allocation11 + $0xe4] sm:$0xf]
    %v2947 = vld [vmem:[#allocation11 + $0xe8] sm:$0xf]
    %v2948 = vld [vmem:[#allocation11 + $0xec] sm:$0xf]
    %v2949 = vld [vmem:[#allocation11 + $0xf0] sm:$0xf]
    %v2950 = vld [vmem:[#allocation11 + $0xf4] sm:$0xf]
    %v2951 = vld [vmem:[#allocation11 + $0xf8] sm:$0xf]
    %v2952 = vld [vmem:[#allocation11 + $0xfc] sm:$0xf]
    %v2953 = vld [vmem:[%s6] sm:$0x1]
    %v2955 = vperm.slane %v2953, 0
    %v3021 = vunpack.c.l.b16 %v2889
    %v3022 = vunpack.c.l.b16 %v2890
    %v3023 = vunpack.c.l.b16 %v2891
    %v3024 = vunpack.c.l.b16 %v2892
    %v3025 = vunpack.c.l.b16 %v2893
    %v3026 = vunpack.c.l.b16 %v2894
    %v3027 = vunpack.c.l.b16 %v2895
    %v3028 = vunpack.c.l.b16 %v2896
    %v3029 = vunpack.c.l.b16 %v2897
    %v3030 = vunpack.c.l.b16 %v2898
    %v3031 = vunpack.c.l.b16 %v2899
    %v3032 = vunpack.c.l.b16 %v2900
    %v3033 = vunpack.c.l.b16 %v2901
    %v3034 = vunpack.c.l.b16 %v2902
    %v3035 = vunpack.c.l.b16 %v2903
    %v3036 = vunpack.c.l.b16 %v2904
    %v3037 = vunpack.c.l.b16 %v2905
    %v3038 = vunpack.c.l.b16 %v2906
    %v3039 = vunpack.c.l.b16 %v2907
    %v3040 = vunpack.c.l.b16 %v2908
    %v3041 = vunpack.c.l.b16 %v2909
    %v3042 = vunpack.c.l.b16 %v2910
    %v3043 = vunpack.c.l.b16 %v2911
    %v3044 = vunpack.c.l.b16 %v2912
    %v3045 = vunpack.c.l.b16 %v2913
    %v3046 = vunpack.c.l.b16 %v2914
    %v3047 = vunpack.c.l.b16 %v2915
    %v3048 = vunpack.c.l.b16 %v2916
    %v3049 = vunpack.c.l.b16 %v2917
    %v3050 = vunpack.c.l.b16 %v2918
    %v3051 = vunpack.c.l.b16 %v2919
    %v3052 = vunpack.c.l.b16 %v2920
    %v3053 = vunpack.c.l.b16 %v2921
    %v3054 = vunpack.c.l.b16 %v2922
    %v3055 = vunpack.c.l.b16 %v2923
    %v3056 = vunpack.c.l.b16 %v2924
    %v3057 = vunpack.c.l.b16 %v2925
    %v3058 = vunpack.c.l.b16 %v2926
    %v3059 = vunpack.c.l.b16 %v2927
    %v3060 = vunpack.c.l.b16 %v2928
    %v3061 = vunpack.c.l.b16 %v2929
    %v3062 = vunpack.c.l.b16 %v2930
    %v3063 = vunpack.c.l.b16 %v2931
    %v3064 = vunpack.c.l.b16 %v2932
    %v3065 = vunpack.c.l.b16 %v2933
    %v3066 = vunpack.c.l.b16 %v2934
    %v3067 = vunpack.c.l.b16 %v2935
    %v3068 = vunpack.c.l.b16 %v2936
    %v3069 = vunpack.c.l.b16 %v2937
    %v3070 = vunpack.c.l.b16 %v2938
    %v3071 = vunpack.c.l.b16 %v2939
    %v3072 = vunpack.c.l.b16 %v2940
    %v3073 = vunpack.c.l.b16 %v2941
    %v3074 = vunpack.c.l.b16 %v2942
    %v3075 = vunpack.c.l.b16 %v2943
    %v3076 = vunpack.c.l.b16 %v2944
    %v3077 = vunpack.c.l.b16 %v2945
    %v3078 = vunpack.c.l.b16 %v2946
    %v3079 = vunpack.c.l.b16 %v2947
    %v3080 = vunpack.c.l.b16 %v2948
    %v3081 = vunpack.c.l.b16 %v2949
    %v3082 = vunpack.c.l.b16 %v2950
    %v3083 = vunpack.c.l.b16 %v2951
    %v3084 = vunpack.c.l.b16 %v2952
    %v3085 = vpack.c.b16 %v3022, %v3021
    %v3086 = vpack.c.b16 %v3024, %v3023
    %v3087 = vpack.c.b16 %v3026, %v3025
    %v3088 = vpack.c.b16 %v3028, %v3027
    %v3089 = vpack.c.b16 %v3030, %v3029
    %v3090 = vpack.c.b16 %v3032, %v3031
    %v3091 = vpack.c.b16 %v3034, %v3033
    %v3092 = vpack.c.b16 %v3036, %v3035
    %v3093 = vpack.c.b16 %v3038, %v3037
    %v3094 = vpack.c.b16 %v3040, %v3039
    %v3095 = vpack.c.b16 %v3042, %v3041
    %v3096 = vpack.c.b16 %v3044, %v3043
    %v3097 = vpack.c.b16 %v3046, %v3045
    %v3098 = vpack.c.b16 %v3048, %v3047
    %v3099 = vpack.c.b16 %v3050, %v3049
    %v3100 = vpack.c.b16 %v3052, %v3051
    %v3101 = vpack.c.b16 %v3054, %v3053
    %v3102 = vpack.c.b16 %v3056, %v3055
    %v3103 = vpack.c.b16 %v3058, %v3057
    %v3104 = vpack.c.b16 %v3060, %v3059
    %v3105 = vpack.c.b16 %v3062, %v3061
    %v3106 = vpack.c.b16 %v3064, %v3063
    %v3107 = vpack.c.b16 %v3066, %v3065
    %v3108 = vpack.c.b16 %v3068, %v3067
    %v3109 = vpack.c.b16 %v3070, %v3069
    %v3110 = vpack.c.b16 %v3072, %v3071
    %v3111 = vpack.c.b16 %v3074, %v3073
    %v3112 = vpack.c.b16 %v3076, %v3075
    %v3113 = vpack.c.b16 %v3078, %v3077
    %v3114 = vpack.c.b16 %v3080, %v3079
    %v3115 = vpack.c.b16 %v3082, %v3081
    %v3116 = vpack.c.b16 %v3084, %v3083
    %3149 = vmatpush.bf16.msra.mxu0 %v3092
    %3150 = vmatpush.bf16.msra.mxu0 %v3091
    %3151 = vmatpush.bf16.msra.mxu0 %v3090
    %3152 = vmatpush.bf16.msra.mxu0 %v3089
    %3153 = vmatpush.bf16.msra.mxu0 %v3088
    %3154 = vmatpush.bf16.msra.mxu0 %v3087
    %3155 = vmatpush.bf16.msra.mxu0 %v3086
    %3156 = vmatpush.bf16.msra.mxu0 %v3085
    %3157 = vmatmul.bf16.gmra.mxu0 %v2885
    %v3158 = vpop.f32.mrf.mxu0
    %v3159 = vadd.f32 %v2955, %v3158
    %v3160 = vpop.f32.mrf.mxu0
    %3161 = vdwg.mxu0
    %3162 = vmatpush.bf16.msra.mxu0 %v3100
    %3163 = vmatpush.bf16.msra.mxu0 %v3099
    %3164 = vmatpush.bf16.msra.mxu0 %v3098
    %3165 = vmatpush.bf16.msra.mxu0 %v3097
    %3166 = vmatpush.bf16.msra.mxu0 %v3096
    %3167 = vmatpush.bf16.msra.mxu0 %v3095
    %3168 = vmatpush.bf16.msra.mxu0 %v3094
    %3169 = vmatpush.bf16.msra.mxu0 %v3093
    %3170 = vmatmul.bf16.gmra.mxu0 %v2886
    %v3171 = vpop.f32.mrf.mxu0
    %v3172 = vadd.f32 %v3159, %v3171
    %v3173 = vpop.f32.mrf.mxu0
    %3174 = vdwg.mxu0
    %3175 = vmatpush.bf16.msra.mxu0 %v3108
    %3176 = vmatpush.bf16.msra.mxu0 %v3107
    %3177 = vmatpush.bf16.msra.mxu0 %v3106
    %3178 = vmatpush.bf16.msra.mxu0 %v3105
    %3179 = vmatpush.bf16.msra.mxu0 %v3104
    %3180 = vmatpush.bf16.msra.mxu0 %v3103
    %3181 = vmatpush.bf16.msra.mxu0 %v3102
    %3182 = vmatpush.bf16.msra.mxu0 %v3101
    %3183 = vmatmul.bf16.gmra.mxu0 %v2887
    %v3184 = vpop.f32.mrf.mxu0
    %v3185 = vadd.f32 %v3172, %v3184
    %v3186 = vpop.f32.mrf.mxu0
    %3187 = vdwg.mxu0
    %3188 = vmatpush.bf16.msra.mxu0 %v3116
    %3189 = vmatpush.bf16.msra.mxu0 %v3115
    %3190 = vmatpush.bf16.msra.mxu0 %v3114
    %3191 = vmatpush.bf16.msra.mxu0 %v3113
    %3192 = vmatpush.bf16.msra.mxu0 %v3112
    %3193 = vmatpush.bf16.msra.mxu0 %v3111
    %3194 = vmatpush.bf16.msra.mxu0 %v3110
    %3195 = vmatpush.bf16.msra.mxu0 %v3109
    %3196 = vmatmul.bf16.gmra.mxu0 %v2888
    %v3197 = vpop.f32.mrf.mxu0
    %v3198 = vadd.f32 %v3185, %v3197
    %v3199 = vpop.f32.mrf.mxu0
    %3200 = vdwg.mxu0
    %3201 = vst [vmem:[#allocation13] sm:$0xff] %v3198
    // Predicated region
    $region54: #{tpu_custom_call.1} parent=1 // pred_check
      _
    $region55: #{tpu_custom_call.1} parent=1 // pred_check_branch
      %3203 = sbr.rel (0) target = $region57
    $region56: #{tpu_custom_call.1} parent=1 // pred_region
      %3205 = vsyncadd [#allocation4], 0
      %s3207 = sshll.u32 [#allocation13], 4
      %s3208 = int_to_ptr.vmem [resolvable:$true] %s3207
      %s3209 = sshll.u32 %s7, 4
      %s3210 = int_to_ptr.hbm [resolvable:$true] %s3209
      %3212 = dma.vmem_to_hbm [thread:$0]  %s3208, 128, %s3210, [#allocation4]
    $region57: #{tpu_custom_call.1} parent=1 // pred_fallthru
      _
    // Predicated region
    $region58: #{tpu_custom_call.1} parent=1 // pred_check
      _
    $region59: #{tpu_custom_call.1} parent=1 // pred_check_branch
      %3214 = sbr.rel (0) target = $region61
    $region60: #{tpu_custom_call.1} parent=1 // pred_region
      %3216 = dma.done [#allocation4], 128
    $region61: #{tpu_custom_call.1} parent=1 // pred_fallthru
      _
    %3217 = vsyncpa [#allocation3], 1
    %3218 = vsyncpa [#allocation6], 1
    %3219 = vsyncpa [#allocation9], 1
    %3220 = vsyncpa [#allocation12], 1
    %3221 = vsyncpa [#allocation4], 1

</llo_original>
